<compile_context>
chip_gen: v7x
topology: tpu7x:2x2x1
jax: 0.10.0
libtpu: 0.0.40
codegen_flags: <defaults>
</compile_context>

<pallas_src>
import functools

import jax
import jax.numpy as jnp
from jax import lax
from jax.experimental import pallas as pl
from jax.experimental.pallas import tpu as pltpu


def _nb1d_kernel(x_ref, masks_ref, wb_ref, out_ref, *, C, R, W, dilated):
    x = x_ref[0]             # (C_pad, R) f32, R = H*W flat, spatial on lanes
    masks = masks_ref[...]   # (8, R) f32 border masks (precomputed on host)
    wb = wb_ref[...]         # (C_pad, 12*C + 4) weight columns + bias columns
    NW = 12 * C              # number of weight columns

    def conv3(v, k, shift, mrow):
        """3-tap conv `k` along the flat spatial (lane) axis; taps at
        flat offsets -shift / 0 / +shift; channel mixing on the VPU."""
        m_lo = masks[mrow:mrow + 1, :]       # valid where r-shift is in-image
        m_hi = masks[mrow + 1:mrow + 2, :]   # valid where r+shift is in-image
        vm = pltpu.roll(v, shift, 1) * m_lo      # v[:, r - shift], zero-padded
        vp = pltpu.roll(v, R - shift, 1) * m_hi  # v[:, r + shift], zero-padded
        taps = (vm, v, vp)
        base = k * 3 * C
        acc = wb[:, NW + k:NW + k + 1]           # bias / folded-BN shift (C_pad, 1)
        for t in range(3):
            vt = taps[t]
            for ci in range(C):
                j = base + t * C + ci
                # (C_pad, 1) weight column * (1, R) input row -> (C_pad, R)
                acc = acc + wb[:, j:j + 1] * vt[ci:ci + 1, :]
        return acc

    d = dilated
    y = jnp.maximum(conv3(x, 0, W, 0), 0.0)        # conv3x1_1 + relu
    y = jnp.maximum(conv3(y, 1, 1, 2), 0.0)        # conv1x3_1 (+ folded bn1) + relu
    y = jnp.maximum(conv3(y, 2, d * W, 4), 0.0)    # conv3x1_2 (dilated) + relu
    y = conv3(y, 3, d, 6)                          # conv1x3_2 (dilated, + folded bn2)
    # TODO(synk): training-mode Dropout2d (p > 0) would need pltpu.prng_* and a
    # per-channel keep mask; with dropprob == 0 it is skipped, same as PyTorch.
    out_ref[0] = jnp.maximum(y + x, 0.0)           # relu(out + input)


def non_bottleneck_1d_forward(x_nchw, params, dilated):
    N, C, H, W = x_nchw.shape
    R = H * W
    d = dilated
    eps = 1e-3
    assert d * W < R, "dilated*W must be smaller than H*W"
    CP = -(-C // 8) * 8   # pad channels to full sublane tiles (free in vregs for C<=8)

    # NCHW kept as-is, HW flattened onto lanes; channel axis zero-padded to CP.
    x_flat = x_nchw.reshape(N, C, R).astype(jnp.float32)
    x_flat = jnp.pad(x_flat, ((0, 0), (0, CP - C), (0, 0)))

    # ---- fold BatchNorm (eval) into the preceding 1x3 convs ----------------
    s1 = params['bn1_gamma'] / jnp.sqrt(params['bn1_var'] + eps)
    t1 = (params['b2'] - params['bn1_mean']) * s1 + params['bn1_beta']
    s2 = params['bn2_gamma'] / jnp.sqrt(params['bn2_var'] + eps)
    t2 = (params['b4'] - params['bn2_mean']) * s2 + params['bn2_beta']

    def taps(w_oihw, scale=None):
        # PyTorch (C_out, C_in, kh, kw) with kh*kw == 3 -> (3, C_in, C_out)
        w3 = jnp.transpose(w_oihw.reshape(C, C, 3), (2, 1, 0))
        if scale is not None:
            w3 = w3 * scale[None, None, :]   # fold BN scale into output channels
        return w3

    w_taps = jnp.stack([taps(params['w1']), taps(params['w2'], s1),
                        taps(params['w3']), taps(params['w4'], s2)],
                       axis=0)                                   # (4, 3, C, C)
    # columns indexed by (conv k, tap t, ci); rows are output channels
    w_cols = jnp.transpose(w_taps, (3, 0, 1, 2)).reshape(C, 12 * C)
    b_cols = jnp.stack([params['b1'], t1, params['b3'], t2], axis=1)   # (C, 4)
    wb = jnp.concatenate([w_cols, b_cols], axis=1).astype(jnp.float32)
    wb = jnp.pad(wb, ((0, CP - C), (0, 0)))                      # (CP, 12*C + 4)

    # ---- host-precomputed border masks (one (1, R) row per tap side) -------
    flat = jnp.arange(R, dtype=jnp.int32)
    col = flat % W

    def pair_flat(s):  # H-direction conv, shift s = multiple of W
        return [flat >= s, flat < R - s]

    def pair_col(s):   # W-direction conv, shift s within a row
        return [col >= s, col < W - s]

    masks = jnp.stack(pair_flat(W) + pair_col(1) + pair_flat(d * W) + pair_col(d),
                      axis=0).astype(jnp.float32)                # (8, R)

    # ---- pallas_call --------------------------------------------------------
    blk = (1, CP, R)
    blk_bytes = CP * R * 4
    const_bytes = masks.size * 4 + wb.size * 4
    vmem_limit = int(min(100 * 2**20,
                         max(16 * 2**20, 4 * blk_bytes + 2 * const_bytes + (2 << 20))))

    kernel = functools.partial(_nb1d_kernel, C=C, R=R, W=W, dilated=d)

    out = pl.pallas_call(
        kernel,
        out_shape=jax.ShapeDtypeStruct((N, CP, R), jnp.float32),
        grid=(N,),
        in_specs=[pl.BlockSpec(blk, lambda n: (n, 0, 0)),
                  pl.BlockSpec(masks.shape, lambda n: (0, 0)),
                  pl.BlockSpec(wb.shape, lambda n: (0, 0))],
        out_specs=pl.BlockSpec(blk, lambda n: (n, 0, 0)),
        compiler_params=pltpu.CompilerParams(
            dimension_semantics=("parallel",),   # batch images are independent
            vmem_limit_bytes=vmem_limit),
    )(x_flat, masks, wb)

    return out[:, :C, :].reshape(N, C, H, W)


def _reference(x_nchw, params, dilated):
    """Pure-JAX f32 reference (XLA convs, HIGHEST precision) mirroring the
    PyTorch forward in eval mode."""
    eps = 1e-3
    x = jnp.transpose(x_nchw, (0, 2, 3, 1)).astype(jnp.float32)  # NHWC

    def conv(v, w_oihw, b, pad, dil):
        w_hwio = jnp.transpose(w_oihw, (2, 3, 1, 0)).astype(jnp.float32)
        o = lax.conv_general_dilated(
            v, w_hwio, window_strides=(1, 1), padding=pad, rhs_dilation=dil,
            dimension_numbers=('NHWC', 'HWIO', 'NHWC'),
            preferred_element_type=jnp.float32, precision=lax.Precision.HIGHEST)
        return o + b.reshape(1, 1, 1, -1)

    def bn(v, g, b, m, var):
        return (v - m) / jnp.sqrt(var + eps) * g + b

    d = dilated
    y = jnp.maximum(conv(x, params['w1'], params['b1'], [(1, 1), (0, 0)], (1, 1)), 0.0)
    y = conv(y, params['w2'], params['b2'], [(0, 0), (1, 1)], (1, 1))
    y = jnp.maximum(bn(y, params['bn1_gamma'], params['bn1_beta'],
                       params['bn1_mean'], params['bn1_var']), 0.0)
    y = jnp.maximum(conv(y, params['w3'], params['b3'], [(d, d), (0, 0)], (d, 1)), 0.0)
    y = conv(y, params['w4'], params['b4'], [(0, 0), (d, d)], (1, d))
    y = bn(y, params['bn2_gamma'], params['bn2_beta'],
           params['bn2_mean'], params['bn2_var'])
    out = jnp.maximum(y + x, 0.0)
    return jnp.transpose(out, (0, 3, 1, 2))


if __name__ == "__main__":
    N, C, H, W = 2, 4, 16, 16
    dilated = 2
    dropprob = 0.0  # dropout branch skipped (matches `if self.dropout.p != 0`)

    keys = jax.random.split(jax.random.PRNGKey(0), 17)

    def wk(i, shape, scale=0.2):
        return jax.random.normal(keys[i], shape, jnp.float32) * scale

    params = dict(
        w1=wk(0, (C, C, 3, 1)), b1=wk(1, (C,)),
        w2=wk(2, (C, C, 1, 3)), b2=wk(3, (C,)),
        w3=wk(4, (C, C, 3, 1)), b3=wk(5, (C,)),
        w4=wk(6, (C, C, 1, 3)), b4=wk(7, (C,)),
        bn1_gamma=1.0 + 0.1 * jax.random.normal(keys[8], (C,)),
        bn1_beta=0.1 * jax.random.normal(keys[9], (C,)),
        bn1_mean=0.1 * jax.random.normal(keys[10], (C,)),
        bn1_var=jax.random.uniform(keys[11], (C,), minval=0.5, maxval=1.5),
        bn2_gamma=1.0 + 0.1 * jax.random.normal(keys[12], (C,)),
        bn2_beta=0.1 * jax.random.normal(keys[13], (C,)),
        bn2_mean=0.1 * jax.random.normal(keys[14], (C,)),
        bn2_var=jax.random.uniform(keys[15], (C,), minval=0.5, maxval=1.5),
    )

    x = jax.random.normal(keys[16], (N, C, H, W), jnp.float32)

    out = non_bottleneck_1d_forward(x, params, dilated)
    out = jax.block_until_ready(out)

    ref = _reference(x, params, dilated)
    err = float(jnp.max(jnp.abs(out - ref)))
    assert out.shape == (N, C, H, W)
    # Kernel is pure f32 (no bf16 MXU); tolerance only covers f32 rounding /
    # accumulation-order and host-side BN-folding differences.
    assert err < 2e-3, f"max abs diff {err}"
    print("KERNEL_OK")
</pallas_src>

<mosaic_0001>
module attributes {stable_mosaic.version = 11 : i64} {
  func.func @_nb1d_kernel(%arg0: i32, %arg1: memref<1x8x256xf32, #tpu.memory_space<vmem>>, %arg2: memref<8x256xf32, #tpu.memory_space<vmem>>, %arg3: memref<8x52xf32, #tpu.memory_space<vmem>>, %arg4: memref<1x8x256xf32, #tpu.memory_space<vmem>>) attributes {dimension_semantics = [#tpu.dimension_semantics<parallel>], iteration_bounds = array<i64: 2>, scalar_prefetch = 0 : i64, scratch_operands = 0 : i64, tpu.core_type = #tpu.core_type<tc>, window_params = [{transform_indices = @transform_0, window_bounds = array<i64: 1, 8, 256>}, {pipeline_mode = #tpu.pipeline_mode<synchronous>, transform_indices = @transform_1, window_bounds = array<i64: 8, 256>}, {pipeline_mode = #tpu.pipeline_mode<synchronous>, transform_indices = @transform_2, window_bounds = array<i64: 8, 52>}, {transform_indices = @transform_3, window_bounds = array<i64: 1, 8, 256>}]} {
    %c0 = arith.constant 0 : index
    %c0_0 = arith.constant 0 : index
    %c0_1 = arith.constant 0 : index
    %0 = vector.load %arg1[%c0, %c0_0, %c0_1] : memref<1x8x256xf32, #tpu.memory_space<vmem>>, vector<1x8x256xf32>
    %1 = vector.shape_cast %0 : vector<1x8x256xf32> to vector<8x256xf32>
    %c0_2 = arith.constant 0 : index
    %c0_3 = arith.constant 0 : index
    %2 = vector.load %arg2[%c0_2, %c0_3] : memref<8x256xf32, #tpu.memory_space<vmem>>, vector<8x256xf32>
    %c0_4 = arith.constant 0 : index
    %c0_5 = arith.constant 0 : index
    %3 = vector.load %arg3[%c0_4, %c0_5] : memref<8x52xf32, #tpu.memory_space<vmem>>, vector<8x52xf32>
    %4 = vector.extract_strided_slice %2 {offsets = [0, 0], sizes = [1, 256], strides = [1, 1]} : vector<8x256xf32> to vector<1x256xf32>
    %5 = vector.extract_strided_slice %2 {offsets = [1, 0], sizes = [1, 256], strides = [1, 1]} : vector<8x256xf32> to vector<1x256xf32>
    %c16_i32 = arith.constant 16 : i32
    %6 = tpu.dynamic_rotate %1 by %c16_i32 dim 1 : vector<8x256xf32>, i32 -> vector<8x256xf32>
    %7 = vector.broadcast %4 : vector<1x256xf32> to vector<8x256xf32>
    %8 = arith.mulf %6, %7 : vector<8x256xf32>
    %c240_i32 = arith.constant 240 : i32
    %9 = tpu.dynamic_rotate %1 by %c240_i32 dim 1 : vector<8x256xf32>, i32 -> vector<8x256xf32>
    %10 = vector.broadcast %5 : vector<1x256xf32> to vector<8x256xf32>
    %11 = arith.mulf %9, %10 : vector<8x256xf32>
    %12 = vector.extract_strided_slice %3 {offsets = [0, 48], sizes = [8, 1], strides = [1, 1]} : vector<8x52xf32> to vector<8x1xf32>
    %13 = vector.extract_strided_slice %3 {offsets = [0, 0], sizes = [8, 1], strides = [1, 1]} : vector<8x52xf32> to vector<8x1xf32>
    %14 = vector.extract_strided_slice %8 {offsets = [0, 0], sizes = [1, 256], strides = [1, 1]} : vector<8x256xf32> to vector<1x256xf32>
    %15 = vector.broadcast %13 : vector<8x1xf32> to vector<8x256xf32>
    %16 = vector.broadcast %14 : vector<1x256xf32> to vector<8x256xf32>
    %17 = arith.mulf %15, %16 : vector<8x256xf32>
    %18 = vector.broadcast %12 : vector<8x1xf32> to vector<8x256xf32>
    %19 = arith.addf %18, %17 : vector<8x256xf32>
    %20 = vector.extract_strided_slice %3 {offsets = [0, 1], sizes = [8, 1], strides = [1, 1]} : vector<8x52xf32> to vector<8x1xf32>
    %21 = vector.extract_strided_slice %8 {offsets = [1, 0], sizes = [1, 256], strides = [1, 1]} : vector<8x256xf32> to vector<1x256xf32>
    %22 = vector.broadcast %20 : vector<8x1xf32> to vector<8x256xf32>
    %23 = vector.broadcast %21 : vector<1x256xf32> to vector<8x256xf32>
    %24 = arith.mulf %22, %23 : vector<8x256xf32>
    %25 = arith.addf %19, %24 : vector<8x256xf32>
    %26 = vector.extract_strided_slice %3 {offsets = [0, 2], sizes = [8, 1], strides = [1, 1]} : vector<8x52xf32> to vector<8x1xf32>
    %27 = vector.extract_strided_slice %8 {offsets = [2, 0], sizes = [1, 256], strides = [1, 1]} : vector<8x256xf32> to vector<1x256xf32>
    %28 = vector.broadcast %26 : vector<8x1xf32> to vector<8x256xf32>
    %29 = vector.broadcast %27 : vector<1x256xf32> to vector<8x256xf32>
    %30 = arith.mulf %28, %29 : vector<8x256xf32>
    %31 = arith.addf %25, %30 : vector<8x256xf32>
    %32 = vector.extract_strided_slice %3 {offsets = [0, 3], sizes = [8, 1], strides = [1, 1]} : vector<8x52xf32> to vector<8x1xf32>
    %33 = vector.extract_strided_slice %8 {offsets = [3, 0], sizes = [1, 256], strides = [1, 1]} : vector<8x256xf32> to vector<1x256xf32>
    %34 = vector.broadcast %32 : vector<8x1xf32> to vector<8x256xf32>
    %35 = vector.broadcast %33 : vector<1x256xf32> to vector<8x256xf32>
    %36 = arith.mulf %34, %35 : vector<8x256xf32>
    %37 = arith.addf %31, %36 : vector<8x256xf32>
    %38 = vector.extract_strided_slice %3 {offsets = [0, 4], sizes = [8, 1], strides = [1, 1]} : vector<8x52xf32> to vector<8x1xf32>
    %39 = vector.extract_strided_slice %1 {offsets = [0, 0], sizes = [1, 256], strides = [1, 1]} : vector<8x256xf32> to vector<1x256xf32>
    %40 = vector.broadcast %38 : vector<8x1xf32> to vector<8x256xf32>
    %41 = vector.broadcast %39 : vector<1x256xf32> to vector<8x256xf32>
    %42 = arith.mulf %40, %41 : vector<8x256xf32>
    %43 = arith.addf %37, %42 : vector<8x256xf32>
    %44 = vector.extract_strided_slice %3 {offsets = [0, 5], sizes = [8, 1], strides = [1, 1]} : vector<8x52xf32> to vector<8x1xf32>
    %45 = vector.extract_strided_slice %1 {offsets = [1, 0], sizes = [1, 256], strides = [1, 1]} : vector<8x256xf32> to vector<1x256xf32>
    %46 = vector.broadcast %44 : vector<8x1xf32> to vector<8x256xf32>
    %47 = vector.broadcast %45 : vector<1x256xf32> to vector<8x256xf32>
    %48 = arith.mulf %46, %47 : vector<8x256xf32>
    %49 = arith.addf %43, %48 : vector<8x256xf32>
    %50 = vector.extract_strided_slice %3 {offsets = [0, 6], sizes = [8, 1], strides = [1, 1]} : vector<8x52xf32> to vector<8x1xf32>
    %51 = vector.extract_strided_slice %1 {offsets = [2, 0], sizes = [1, 256], strides = [1, 1]} : vector<8x256xf32> to vector<1x256xf32>
    %52 = vector.broadcast %50 : vector<8x1xf32> to vector<8x256xf32>
    %53 = vector.broadcast %51 : vector<1x256xf32> to vector<8x256xf32>
    %54 = arith.mulf %52, %53 : vector<8x256xf32>
    %55 = arith.addf %49, %54 : vector<8x256xf32>
    %56 = vector.extract_strided_slice %3 {offsets = [0, 7], sizes = [8, 1], strides = [1, 1]} : vector<8x52xf32> to vector<8x1xf32>
    %57 = vector.extract_strided_slice %1 {offsets = [3, 0], sizes = [1, 256], strides = [1, 1]} : vector<8x256xf32> to vector<1x256xf32>
    %58 = vector.broadcast %56 : vector<8x1xf32> to vector<8x256xf32>
    %59 = vector.broadcast %57 : vector<1x256xf32> to vector<8x256xf32>
    %60 = arith.mulf %58, %59 : vector<8x256xf32>
    %61 = arith.addf %55, %60 : vector<8x256xf32>
    %62 = vector.extract_strided_slice %3 {offsets = [0, 8], sizes = [8, 1], strides = [1, 1]} : vector<8x52xf32> to vector<8x1xf32>
    %63 = vector.extract_strided_slice %11 {offsets = [0, 0], sizes = [1, 256], strides = [1, 1]} : vector<8x256xf32> to vector<1x256xf32>
    %64 = vector.broadcast %62 : vector<8x1xf32> to vector<8x256xf32>
    %65 = vector.broadcast %63 : vector<1x256xf32> to vector<8x256xf32>
    %66 = arith.mulf %64, %65 : vector<8x256xf32>
    %67 = arith.addf %61, %66 : vector<8x256xf32>
    %68 = vector.extract_strided_slice %3 {offsets = [0, 9], sizes = [8, 1], strides = [1, 1]} : vector<8x52xf32> to vector<8x1xf32>
    %69 = vector.extract_strided_slice %11 {offsets = [1, 0], sizes = [1, 256], strides = [1, 1]} : vector<8x256xf32> to vector<1x256xf32>
    %70 = vector.broadcast %68 : vector<8x1xf32> to vector<8x256xf32>
    %71 = vector.broadcast %69 : vector<1x256xf32> to vector<8x256xf32>
    %72 = arith.mulf %70, %71 : vector<8x256xf32>
    %73 = arith.addf %67, %72 : vector<8x256xf32>
    %74 = vector.extract_strided_slice %3 {offsets = [0, 10], sizes = [8, 1], strides = [1, 1]} : vector<8x52xf32> to vector<8x1xf32>
    %75 = vector.extract_strided_slice %11 {offsets = [2, 0], sizes = [1, 256], strides = [1, 1]} : vector<8x256xf32> to vector<1x256xf32>
    %76 = vector.broadcast %74 : vector<8x1xf32> to vector<8x256xf32>
    %77 = vector.broadcast %75 : vector<1x256xf32> to vector<8x256xf32>
    %78 = arith.mulf %76, %77 : vector<8x256xf32>
    %79 = arith.addf %73, %78 : vector<8x256xf32>
    %80 = vector.extract_strided_slice %3 {offsets = [0, 11], sizes = [8, 1], strides = [1, 1]} : vector<8x52xf32> to vector<8x1xf32>
    %81 = vector.extract_strided_slice %11 {offsets = [3, 0], sizes = [1, 256], strides = [1, 1]} : vector<8x256xf32> to vector<1x256xf32>
    %82 = vector.broadcast %80 : vector<8x1xf32> to vector<8x256xf32>
    %83 = vector.broadcast %81 : vector<1x256xf32> to vector<8x256xf32>
    %84 = arith.mulf %82, %83 : vector<8x256xf32>
    %85 = arith.addf %79, %84 : vector<8x256xf32>
    %cst = arith.constant 0.000000e+00 : f32
    %86 = vector.broadcast %cst : f32 to vector<8x256xf32>
    %87 = arith.maximumf %85, %86 : vector<8x256xf32>
    %88 = vector.extract_strided_slice %2 {offsets = [2, 0], sizes = [1, 256], strides = [1, 1]} : vector<8x256xf32> to vector<1x256xf32>
    %89 = vector.extract_strided_slice %2 {offsets = [3, 0], sizes = [1, 256], strides = [1, 1]} : vector<8x256xf32> to vector<1x256xf32>
    %c1_i32 = arith.constant 1 : i32
    %90 = tpu.dynamic_rotate %87 by %c1_i32 dim 1 : vector<8x256xf32>, i32 -> vector<8x256xf32>
    %91 = vector.broadcast %88 : vector<1x256xf32> to vector<8x256xf32>
    %92 = arith.mulf %90, %91 : vector<8x256xf32>
    %c255_i32 = arith.constant 255 : i32
    %93 = tpu.dynamic_rotate %87 by %c255_i32 dim 1 : vector<8x256xf32>, i32 -> vector<8x256xf32>
    %94 = vector.broadcast %89 : vector<1x256xf32> to vector<8x256xf32>
    %95 = arith.mulf %93, %94 : vector<8x256xf32>
    %96 = vector.extract_strided_slice %3 {offsets = [0, 49], sizes = [8, 1], strides = [1, 1]} : vector<8x52xf32> to vector<8x1xf32>
    %97 = vector.extract_strided_slice %3 {offsets = [0, 12], sizes = [8, 1], strides = [1, 1]} : vector<8x52xf32> to vector<8x1xf32>
    %98 = vector.extract_strided_slice %92 {offsets = [0, 0], sizes = [1, 256], strides = [1, 1]} : vector<8x256xf32> to vector<1x256xf32>
    %99 = vector.broadcast %97 : vector<8x1xf32> to vector<8x256xf32>
    %100 = vector.broadcast %98 : vector<1x256xf32> to vector<8x256xf32>
    %101 = arith.mulf %99, %100 : vector<8x256xf32>
    %102 = vector.broadcast %96 : vector<8x1xf32> to vector<8x256xf32>
    %103 = arith.addf %102, %101 : vector<8x256xf32>
    %104 = vector.extract_strided_slice %3 {offsets = [0, 13], sizes = [8, 1], strides = [1, 1]} : vector<8x52xf32> to vector<8x1xf32>
    %105 = vector.extract_strided_slice %92 {offsets = [1, 0], sizes = [1, 256], strides = [1, 1]} : vector<8x256xf32> to vector<1x256xf32>
    %106 = vector.broadcast %104 : vector<8x1xf32> to vector<8x256xf32>
    %107 = vector.broadcast %105 : vector<1x256xf32> to vector<8x256xf32>
    %108 = arith.mulf %106, %107 : vector<8x256xf32>
    %109 = arith.addf %103, %108 : vector<8x256xf32>
    %110 = vector.extract_strided_slice %3 {offsets = [0, 14], sizes = [8, 1], strides = [1, 1]} : vector<8x52xf32> to vector<8x1xf32>
    %111 = vector.extract_strided_slice %92 {offsets = [2, 0], sizes = [1, 256], strides = [1, 1]} : vector<8x256xf32> to vector<1x256xf32>
    %112 = vector.broadcast %110 : vector<8x1xf32> to vector<8x256xf32>
    %113 = vector.broadcast %111 : vector<1x256xf32> to vector<8x256xf32>
    %114 = arith.mulf %112, %113 : vector<8x256xf32>
    %115 = arith.addf %109, %114 : vector<8x256xf32>
    %116 = vector.extract_strided_slice %3 {offsets = [0, 15], sizes = [8, 1], strides = [1, 1]} : vector<8x52xf32> to vector<8x1xf32>
    %117 = vector.extract_strided_slice %92 {offsets = [3, 0], sizes = [1, 256], strides = [1, 1]} : vector<8x256xf32> to vector<1x256xf32>
    %118 = vector.broadcast %116 : vector<8x1xf32> to vector<8x256xf32>
    %119 = vector.broadcast %117 : vector<1x256xf32> to vector<8x256xf32>
    %120 = arith.mulf %118, %119 : vector<8x256xf32>
    %121 = arith.addf %115, %120 : vector<8x256xf32>
    %122 = vector.extract_strided_slice %3 {offsets = [0, 16], sizes = [8, 1], strides = [1, 1]} : vector<8x52xf32> to vector<8x1xf32>
    %123 = vector.extract_strided_slice %87 {offsets = [0, 0], sizes = [1, 256], strides = [1, 1]} : vector<8x256xf32> to vector<1x256xf32>
    %124 = vector.broadcast %122 : vector<8x1xf32> to vector<8x256xf32>
    %125 = vector.broadcast %123 : vector<1x256xf32> to vector<8x256xf32>
    %126 = arith.mulf %124, %125 : vector<8x256xf32>
    %127 = arith.addf %121, %126 : vector<8x256xf32>
    %128 = vector.extract_strided_slice %3 {offsets = [0, 17], sizes = [8, 1], strides = [1, 1]} : vector<8x52xf32> to vector<8x1xf32>
    %129 = vector.extract_strided_slice %87 {offsets = [1, 0], sizes = [1, 256], strides = [1, 1]} : vector<8x256xf32> to vector<1x256xf32>
    %130 = vector.broadcast %128 : vector<8x1xf32> to vector<8x256xf32>
    %131 = vector.broadcast %129 : vector<1x256xf32> to vector<8x256xf32>
    %132 = arith.mulf %130, %131 : vector<8x256xf32>
    %133 = arith.addf %127, %132 : vector<8x256xf32>
    %134 = vector.extract_strided_slice %3 {offsets = [0, 18], sizes = [8, 1], strides = [1, 1]} : vector<8x52xf32> to vector<8x1xf32>
    %135 = vector.extract_strided_slice %87 {offsets = [2, 0], sizes = [1, 256], strides = [1, 1]} : vector<8x256xf32> to vector<1x256xf32>
    %136 = vector.broadcast %134 : vector<8x1xf32> to vector<8x256xf32>
    %137 = vector.broadcast %135 : vector<1x256xf32> to vector<8x256xf32>
    %138 = arith.mulf %136, %137 : vector<8x256xf32>
    %139 = arith.addf %133, %138 : vector<8x256xf32>
    %140 = vector.extract_strided_slice %3 {offsets = [0, 19], sizes = [8, 1], strides = [1, 1]} : vector<8x52xf32> to vector<8x1xf32>
    %141 = vector.extract_strided_slice %87 {offsets = [3, 0], sizes = [1, 256], strides = [1, 1]} : vector<8x256xf32> to vector<1x256xf32>
    %142 = vector.broadcast %140 : vector<8x1xf32> to vector<8x256xf32>
    %143 = vector.broadcast %141 : vector<1x256xf32> to vector<8x256xf32>
    %144 = arith.mulf %142, %143 : vector<8x256xf32>
    %145 = arith.addf %139, %144 : vector<8x256xf32>
    %146 = vector.extract_strided_slice %3 {offsets = [0, 20], sizes = [8, 1], strides = [1, 1]} : vector<8x52xf32> to vector<8x1xf32>
    %147 = vector.extract_strided_slice %95 {offsets = [0, 0], sizes = [1, 256], strides = [1, 1]} : vector<8x256xf32> to vector<1x256xf32>
    %148 = vector.broadcast %146 : vector<8x1xf32> to vector<8x256xf32>
    %149 = vector.broadcast %147 : vector<1x256xf32> to vector<8x256xf32>
    %150 = arith.mulf %148, %149 : vector<8x256xf32>
    %151 = arith.addf %145, %150 : vector<8x256xf32>
    %152 = vector.extract_strided_slice %3 {offsets = [0, 21], sizes = [8, 1], strides = [1, 1]} : vector<8x52xf32> to vector<8x1xf32>
    %153 = vector.extract_strided_slice %95 {offsets = [1, 0], sizes = [1, 256], strides = [1, 1]} : vector<8x256xf32> to vector<1x256xf32>
    %154 = vector.broadcast %152 : vector<8x1xf32> to vector<8x256xf32>
    %155 = vector.broadcast %153 : vector<1x256xf32> to vector<8x256xf32>
    %156 = arith.mulf %154, %155 : vector<8x256xf32>
    %157 = arith.addf %151, %156 : vector<8x256xf32>
    %158 = vector.extract_strided_slice %3 {offsets = [0, 22], sizes = [8, 1], strides = [1, 1]} : vector<8x52xf32> to vector<8x1xf32>
    %159 = vector.extract_strided_slice %95 {offsets = [2, 0], sizes = [1, 256], strides = [1, 1]} : vector<8x256xf32> to vector<1x256xf32>
    %160 = vector.broadcast %158 : vector<8x1xf32> to vector<8x256xf32>
    %161 = vector.broadcast %159 : vector<1x256xf32> to vector<8x256xf32>
    %162 = arith.mulf %160, %161 : vector<8x256xf32>
    %163 = arith.addf %157, %162 : vector<8x256xf32>
    %164 = vector.extract_strided_slice %3 {offsets = [0, 23], sizes = [8, 1], strides = [1, 1]} : vector<8x52xf32> to vector<8x1xf32>
    %165 = vector.extract_strided_slice %95 {offsets = [3, 0], sizes = [1, 256], strides = [1, 1]} : vector<8x256xf32> to vector<1x256xf32>
    %166 = vector.broadcast %164 : vector<8x1xf32> to vector<8x256xf32>
    %167 = vector.broadcast %165 : vector<1x256xf32> to vector<8x256xf32>
    %168 = arith.mulf %166, %167 : vector<8x256xf32>
    %169 = arith.addf %163, %168 : vector<8x256xf32>
    %cst_6 = arith.constant 0.000000e+00 : f32
    %170 = vector.broadcast %cst_6 : f32 to vector<8x256xf32>
    %171 = arith.maximumf %169, %170 : vector<8x256xf32>
    %172 = vector.extract_strided_slice %2 {offsets = [4, 0], sizes = [1, 256], strides = [1, 1]} : vector<8x256xf32> to vector<1x256xf32>
    %173 = vector.extract_strided_slice %2 {offsets = [5, 0], sizes = [1, 256], strides = [1, 1]} : vector<8x256xf32> to vector<1x256xf32>
    %c32_i32 = arith.constant 32 : i32
    %174 = tpu.dynamic_rotate %171 by %c32_i32 dim 1 : vector<8x256xf32>, i32 -> vector<8x256xf32>
    %175 = vector.broadcast %172 : vector<1x256xf32> to vector<8x256xf32>
    %176 = arith.mulf %174, %175 : vector<8x256xf32>
    %c224_i32 = arith.constant 224 : i32
    %177 = tpu.dynamic_rotate %171 by %c224_i32 dim 1 : vector<8x256xf32>, i32 -> vector<8x256xf32>
    %178 = vector.broadcast %173 : vector<1x256xf32> to vector<8x256xf32>
    %179 = arith.mulf %177, %178 : vector<8x256xf32>
    %180 = vector.extract_strided_slice %3 {offsets = [0, 50], sizes = [8, 1], strides = [1, 1]} : vector<8x52xf32> to vector<8x1xf32>
    %181 = vector.extract_strided_slice %3 {offsets = [0, 24], sizes = [8, 1], strides = [1, 1]} : vector<8x52xf32> to vector<8x1xf32>
    %182 = vector.extract_strided_slice %176 {offsets = [0, 0], sizes = [1, 256], strides = [1, 1]} : vector<8x256xf32> to vector<1x256xf32>
    %183 = vector.broadcast %181 : vector<8x1xf32> to vector<8x256xf32>
    %184 = vector.broadcast %182 : vector<1x256xf32> to vector<8x256xf32>
    %185 = arith.mulf %183, %184 : vector<8x256xf32>
    %186 = vector.broadcast %180 : vector<8x1xf32> to vector<8x256xf32>
    %187 = arith.addf %186, %185 : vector<8x256xf32>
    %188 = vector.extract_strided_slice %3 {offsets = [0, 25], sizes = [8, 1], strides = [1, 1]} : vector<8x52xf32> to vector<8x1xf32>
    %189 = vector.extract_strided_slice %176 {offsets = [1, 0], sizes = [1, 256], strides = [1, 1]} : vector<8x256xf32> to vector<1x256xf32>
    %190 = vector.broadcast %188 : vector<8x1xf32> to vector<8x256xf32>
    %191 = vector.broadcast %189 : vector<1x256xf32> to vector<8x256xf32>
    %192 = arith.mulf %190, %191 : vector<8x256xf32>
    %193 = arith.addf %187, %192 : vector<8x256xf32>
    %194 = vector.extract_strided_slice %3 {offsets = [0, 26], sizes = [8, 1], strides = [1, 1]} : vector<8x52xf32> to vector<8x1xf32>
    %195 = vector.extract_strided_slice %176 {offsets = [2, 0], sizes = [1, 256], strides = [1, 1]} : vector<8x256xf32> to vector<1x256xf32>
    %196 = vector.broadcast %194 : vector<8x1xf32> to vector<8x256xf32>
    %197 = vector.broadcast %195 : vector<1x256xf32> to vector<8x256xf32>
    %198 = arith.mulf %196, %197 : vector<8x256xf32>
    %199 = arith.addf %193, %198 : vector<8x256xf32>
    %200 = vector.extract_strided_slice %3 {offsets = [0, 27], sizes = [8, 1], strides = [1, 1]} : vector<8x52xf32> to vector<8x1xf32>
    %201 = vector.extract_strided_slice %176 {offsets = [3, 0], sizes = [1, 256], strides = [1, 1]} : vector<8x256xf32> to vector<1x256xf32>
    %202 = vector.broadcast %200 : vector<8x1xf32> to vector<8x256xf32>
    %203 = vector.broadcast %201 : vector<1x256xf32> to vector<8x256xf32>
    %204 = arith.mulf %202, %203 : vector<8x256xf32>
    %205 = arith.addf %199, %204 : vector<8x256xf32>
    %206 = vector.extract_strided_slice %3 {offsets = [0, 28], sizes = [8, 1], strides = [1, 1]} : vector<8x52xf32> to vector<8x1xf32>
    %207 = vector.extract_strided_slice %171 {offsets = [0, 0], sizes = [1, 256], strides = [1, 1]} : vector<8x256xf32> to vector<1x256xf32>
    %208 = vector.broadcast %206 : vector<8x1xf32> to vector<8x256xf32>
    %209 = vector.broadcast %207 : vector<1x256xf32> to vector<8x256xf32>
    %210 = arith.mulf %208, %209 : vector<8x256xf32>
    %211 = arith.addf %205, %210 : vector<8x256xf32>
    %212 = vector.extract_strided_slice %3 {offsets = [0, 29], sizes = [8, 1], strides = [1, 1]} : vector<8x52xf32> to vector<8x1xf32>
    %213 = vector.extract_strided_slice %171 {offsets = [1, 0], sizes = [1, 256], strides = [1, 1]} : vector<8x256xf32> to vector<1x256xf32>
    %214 = vector.broadcast %212 : vector<8x1xf32> to vector<8x256xf32>
    %215 = vector.broadcast %213 : vector<1x256xf32> to vector<8x256xf32>
    %216 = arith.mulf %214, %215 : vector<8x256xf32>
    %217 = arith.addf %211, %216 : vector<8x256xf32>
    %218 = vector.extract_strided_slice %3 {offsets = [0, 30], sizes = [8, 1], strides = [1, 1]} : vector<8x52xf32> to vector<8x1xf32>
    %219 = vector.extract_strided_slice %171 {offsets = [2, 0], sizes = [1, 256], strides = [1, 1]} : vector<8x256xf32> to vector<1x256xf32>
    %220 = vector.broadcast %218 : vector<8x1xf32> to vector<8x256xf32>
    %221 = vector.broadcast %219 : vector<1x256xf32> to vector<8x256xf32>
    %222 = arith.mulf %220, %221 : vector<8x256xf32>
    %223 = arith.addf %217, %222 : vector<8x256xf32>
    %224 = vector.extract_strided_slice %3 {offsets = [0, 31], sizes = [8, 1], strides = [1, 1]} : vector<8x52xf32> to vector<8x1xf32>
    %225 = vector.extract_strided_slice %171 {offsets = [3, 0], sizes = [1, 256], strides = [1, 1]} : vector<8x256xf32> to vector<1x256xf32>
    %226 = vector.broadcast %224 : vector<8x1xf32> to vector<8x256xf32>
    %227 = vector.broadcast %225 : vector<1x256xf32> to vector<8x256xf32>
    %228 = arith.mulf %226, %227 : vector<8x256xf32>
    %229 = arith.addf %223, %228 : vector<8x256xf32>
    %230 = vector.extract_strided_slice %3 {offsets = [0, 32], sizes = [8, 1], strides = [1, 1]} : vector<8x52xf32> to vector<8x1xf32>
    %231 = vector.extract_strided_slice %179 {offsets = [0, 0], sizes = [1, 256], strides = [1, 1]} : vector<8x256xf32> to vector<1x256xf32>
    %232 = vector.broadcast %230 : vector<8x1xf32> to vector<8x256xf32>
    %233 = vector.broadcast %231 : vector<1x256xf32> to vector<8x256xf32>
    %234 = arith.mulf %232, %233 : vector<8x256xf32>
    %235 = arith.addf %229, %234 : vector<8x256xf32>
    %236 = vector.extract_strided_slice %3 {offsets = [0, 33], sizes = [8, 1], strides = [1, 1]} : vector<8x52xf32> to vector<8x1xf32>
    %237 = vector.extract_strided_slice %179 {offsets = [1, 0], sizes = [1, 256], strides = [1, 1]} : vector<8x256xf32> to vector<1x256xf32>
    %238 = vector.broadcast %236 : vector<8x1xf32> to vector<8x256xf32>
    %239 = vector.broadcast %237 : vector<1x256xf32> to vector<8x256xf32>
    %240 = arith.mulf %238, %239 : vector<8x256xf32>
    %241 = arith.addf %235, %240 : vector<8x256xf32>
    %242 = vector.extract_strided_slice %3 {offsets = [0, 34], sizes = [8, 1], strides = [1, 1]} : vector<8x52xf32> to vector<8x1xf32>
    %243 = vector.extract_strided_slice %179 {offsets = [2, 0], sizes = [1, 256], strides = [1, 1]} : vector<8x256xf32> to vector<1x256xf32>
    %244 = vector.broadcast %242 : vector<8x1xf32> to vector<8x256xf32>
    %245 = vector.broadcast %243 : vector<1x256xf32> to vector<8x256xf32>
    %246 = arith.mulf %244, %245 : vector<8x256xf32>
    %247 = arith.addf %241, %246 : vector<8x256xf32>
    %248 = vector.extract_strided_slice %3 {offsets = [0, 35], sizes = [8, 1], strides = [1, 1]} : vector<8x52xf32> to vector<8x1xf32>
    %249 = vector.extract_strided_slice %179 {offsets = [3, 0], sizes = [1, 256], strides = [1, 1]} : vector<8x256xf32> to vector<1x256xf32>
    %250 = vector.broadcast %248 : vector<8x1xf32> to vector<8x256xf32>
    %251 = vector.broadcast %249 : vector<1x256xf32> to vector<8x256xf32>
    %252 = arith.mulf %250, %251 : vector<8x256xf32>
    %253 = arith.addf %247, %252 : vector<8x256xf32>
    %cst_7 = arith.constant 0.000000e+00 : f32
    %254 = vector.broadcast %cst_7 : f32 to vector<8x256xf32>
    %255 = arith.maximumf %253, %254 : vector<8x256xf32>
    %256 = vector.extract_strided_slice %2 {offsets = [6, 0], sizes = [1, 256], strides = [1, 1]} : vector<8x256xf32> to vector<1x256xf32>
    %257 = vector.extract_strided_slice %2 {offsets = [7, 0], sizes = [1, 256], strides = [1, 1]} : vector<8x256xf32> to vector<1x256xf32>
    %c2_i32 = arith.constant 2 : i32
    %258 = tpu.dynamic_rotate %255 by %c2_i32 dim 1 : vector<8x256xf32>, i32 -> vector<8x256xf32>
    %259 = vector.broadcast %256 : vector<1x256xf32> to vector<8x256xf32>
    %260 = arith.mulf %258, %259 : vector<8x256xf32>
    %c254_i32 = arith.constant 254 : i32
    %261 = tpu.dynamic_rotate %255 by %c254_i32 dim 1 : vector<8x256xf32>, i32 -> vector<8x256xf32>
    %262 = vector.broadcast %257 : vector<1x256xf32> to vector<8x256xf32>
    %263 = arith.mulf %261, %262 : vector<8x256xf32>
    %264 = vector.extract_strided_slice %3 {offsets = [0, 51], sizes = [8, 1], strides = [1, 1]} : vector<8x52xf32> to vector<8x1xf32>
    %265 = vector.extract_strided_slice %3 {offsets = [0, 36], sizes = [8, 1], strides = [1, 1]} : vector<8x52xf32> to vector<8x1xf32>
    %266 = vector.extract_strided_slice %260 {offsets = [0, 0], sizes = [1, 256], strides = [1, 1]} : vector<8x256xf32> to vector<1x256xf32>
    %267 = vector.broadcast %265 : vector<8x1xf32> to vector<8x256xf32>
    %268 = vector.broadcast %266 : vector<1x256xf32> to vector<8x256xf32>
    %269 = arith.mulf %267, %268 : vector<8x256xf32>
    %270 = vector.broadcast %264 : vector<8x1xf32> to vector<8x256xf32>
    %271 = arith.addf %270, %269 : vector<8x256xf32>
    %272 = vector.extract_strided_slice %3 {offsets = [0, 37], sizes = [8, 1], strides = [1, 1]} : vector<8x52xf32> to vector<8x1xf32>
    %273 = vector.extract_strided_slice %260 {offsets = [1, 0], sizes = [1, 256], strides = [1, 1]} : vector<8x256xf32> to vector<1x256xf32>
    %274 = vector.broadcast %272 : vector<8x1xf32> to vector<8x256xf32>
    %275 = vector.broadcast %273 : vector<1x256xf32> to vector<8x256xf32>
    %276 = arith.mulf %274, %275 : vector<8x256xf32>
    %277 = arith.addf %271, %276 : vector<8x256xf32>
    %278 = vector.extract_strided_slice %3 {offsets = [0, 38], sizes = [8, 1], strides = [1, 1]} : vector<8x52xf32> to vector<8x1xf32>
    %279 = vector.extract_strided_slice %260 {offsets = [2, 0], sizes = [1, 256], strides = [1, 1]} : vector<8x256xf32> to vector<1x256xf32>
    %280 = vector.broadcast %278 : vector<8x1xf32> to vector<8x256xf32>
    %281 = vector.broadcast %279 : vector<1x256xf32> to vector<8x256xf32>
    %282 = arith.mulf %280, %281 : vector<8x256xf32>
    %283 = arith.addf %277, %282 : vector<8x256xf32>
    %284 = vector.extract_strided_slice %3 {offsets = [0, 39], sizes = [8, 1], strides = [1, 1]} : vector<8x52xf32> to vector<8x1xf32>
    %285 = vector.extract_strided_slice %260 {offsets = [3, 0], sizes = [1, 256], strides = [1, 1]} : vector<8x256xf32> to vector<1x256xf32>
    %286 = vector.broadcast %284 : vector<8x1xf32> to vector<8x256xf32>
    %287 = vector.broadcast %285 : vector<1x256xf32> to vector<8x256xf32>
    %288 = arith.mulf %286, %287 : vector<8x256xf32>
    %289 = arith.addf %283, %288 : vector<8x256xf32>
    %290 = vector.extract_strided_slice %3 {offsets = [0, 40], sizes = [8, 1], strides = [1, 1]} : vector<8x52xf32> to vector<8x1xf32>
    %291 = vector.extract_strided_slice %255 {offsets = [0, 0], sizes = [1, 256], strides = [1, 1]} : vector<8x256xf32> to vector<1x256xf32>
    %292 = vector.broadcast %290 : vector<8x1xf32> to vector<8x256xf32>
    %293 = vector.broadcast %291 : vector<1x256xf32> to vector<8x256xf32>
    %294 = arith.mulf %292, %293 : vector<8x256xf32>
    %295 = arith.addf %289, %294 : vector<8x256xf32>
    %296 = vector.extract_strided_slice %3 {offsets = [0, 41], sizes = [8, 1], strides = [1, 1]} : vector<8x52xf32> to vector<8x1xf32>
    %297 = vector.extract_strided_slice %255 {offsets = [1, 0], sizes = [1, 256], strides = [1, 1]} : vector<8x256xf32> to vector<1x256xf32>
    %298 = vector.broadcast %296 : vector<8x1xf32> to vector<8x256xf32>
    %299 = vector.broadcast %297 : vector<1x256xf32> to vector<8x256xf32>
    %300 = arith.mulf %298, %299 : vector<8x256xf32>
    %301 = arith.addf %295, %300 : vector<8x256xf32>
    %302 = vector.extract_strided_slice %3 {offsets = [0, 42], sizes = [8, 1], strides = [1, 1]} : vector<8x52xf32> to vector<8x1xf32>
    %303 = vector.extract_strided_slice %255 {offsets = [2, 0], sizes = [1, 256], strides = [1, 1]} : vector<8x256xf32> to vector<1x256xf32>
    %304 = vector.broadcast %302 : vector<8x1xf32> to vector<8x256xf32>
    %305 = vector.broadcast %303 : vector<1x256xf32> to vector<8x256xf32>
    %306 = arith.mulf %304, %305 : vector<8x256xf32>
    %307 = arith.addf %301, %306 : vector<8x256xf32>
    %308 = vector.extract_strided_slice %3 {offsets = [0, 43], sizes = [8, 1], strides = [1, 1]} : vector<8x52xf32> to vector<8x1xf32>
    %309 = vector.extract_strided_slice %255 {offsets = [3, 0], sizes = [1, 256], strides = [1, 1]} : vector<8x256xf32> to vector<1x256xf32>
    %310 = vector.broadcast %308 : vector<8x1xf32> to vector<8x256xf32>
    %311 = vector.broadcast %309 : vector<1x256xf32> to vector<8x256xf32>
    %312 = arith.mulf %310, %311 : vector<8x256xf32>
    %313 = arith.addf %307, %312 : vector<8x256xf32>
    %314 = vector.extract_strided_slice %3 {offsets = [0, 44], sizes = [8, 1], strides = [1, 1]} : vector<8x52xf32> to vector<8x1xf32>
    %315 = vector.extract_strided_slice %263 {offsets = [0, 0], sizes = [1, 256], strides = [1, 1]} : vector<8x256xf32> to vector<1x256xf32>
    %316 = vector.broadcast %314 : vector<8x1xf32> to vector<8x256xf32>
    %317 = vector.broadcast %315 : vector<1x256xf32> to vector<8x256xf32>
    %318 = arith.mulf %316, %317 : vector<8x256xf32>
    %319 = arith.addf %313, %318 : vector<8x256xf32>
    %320 = vector.extract_strided_slice %3 {offsets = [0, 45], sizes = [8, 1], strides = [1, 1]} : vector<8x52xf32> to vector<8x1xf32>
    %321 = vector.extract_strided_slice %263 {offsets = [1, 0], sizes = [1, 256], strides = [1, 1]} : vector<8x256xf32> to vector<1x256xf32>
    %322 = vector.broadcast %320 : vector<8x1xf32> to vector<8x256xf32>
    %323 = vector.broadcast %321 : vector<1x256xf32> to vector<8x256xf32>
    %324 = arith.mulf %322, %323 : vector<8x256xf32>
    %325 = arith.addf %319, %324 : vector<8x256xf32>
    %326 = vector.extract_strided_slice %3 {offsets = [0, 46], sizes = [8, 1], strides = [1, 1]} : vector<8x52xf32> to vector<8x1xf32>
    %327 = vector.extract_strided_slice %263 {offsets = [2, 0], sizes = [1, 256], strides = [1, 1]} : vector<8x256xf32> to vector<1x256xf32>
    %328 = vector.broadcast %326 : vector<8x1xf32> to vector<8x256xf32>
    %329 = vector.broadcast %327 : vector<1x256xf32> to vector<8x256xf32>
    %330 = arith.mulf %328, %329 : vector<8x256xf32>
    %331 = arith.addf %325, %330 : vector<8x256xf32>
    %332 = vector.extract_strided_slice %3 {offsets = [0, 47], sizes = [8, 1], strides = [1, 1]} : vector<8x52xf32> to vector<8x1xf32>
    %333 = vector.extract_strided_slice %263 {offsets = [3, 0], sizes = [1, 256], strides = [1, 1]} : vector<8x256xf32> to vector<1x256xf32>
    %334 = vector.broadcast %332 : vector<8x1xf32> to vector<8x256xf32>
    %335 = vector.broadcast %333 : vector<1x256xf32> to vector<8x256xf32>
    %336 = arith.mulf %334, %335 : vector<8x256xf32>
    %337 = arith.addf %331, %336 : vector<8x256xf32>
    %338 = arith.addf %337, %1 : vector<8x256xf32>
    %cst_8 = arith.constant 0.000000e+00 : f32
    %339 = vector.broadcast %cst_8 : f32 to vector<8x256xf32>
    %340 = arith.maximumf %338, %339 : vector<8x256xf32>
    %c0_9 = arith.constant 0 : index
    %c0_10 = arith.constant 0 : index
    %c0_11 = arith.constant 0 : index
    %341 = vector.load %arg4[%c0_9, %c0_10, %c0_11] : memref<1x8x256xf32, #tpu.memory_space<vmem>>, vector<1x8x256xf32>
    %342 = vector.shape_cast %341 : vector<1x8x256xf32> to vector<8x256xf32>
    %343 = vector.shape_cast %340 : vector<8x256xf32> to vector<1x8x256xf32>
    tpu.vector_store %arg4[%c0_9, %c0_10, %c0_11], %343 {strides = array<i32>} : memref<1x8x256xf32, #tpu.memory_space<vmem>>, vector<1x8x256xf32>,
    return
  }
  func.func @transform_0(%arg0: i32) -> (i32, i32, i32) {
    %c0_i32 = arith.constant 0 : i32
    %c0_i32_0 = arith.constant 0 : i32
    %c0_i32_1 = arith.constant 0 : i32
    return %arg0, %c0_i32, %c0_i32_0 : i32, i32, i32
  }
  func.func @transform_1(%arg0: i32) -> (i32, i32) {
    %c0_i32 = arith.constant 0 : i32
    %c0_i32_0 = arith.constant 0 : i32
    %c0_i32_1 = arith.constant 0 : i32
    return %c0_i32, %c0_i32_0 : i32, i32
  }
  func.func @transform_2(%arg0: i32) -> (i32, i32) {
    %c0_i32 = arith.constant 0 : i32
    %c0_i32_0 = arith.constant 0 : i32
    %c0_i32_1 = arith.constant 0 : i32
    return %c0_i32, %c0_i32_0 : i32, i32
  }
  func.func @transform_3(%arg0: i32) -> (i32, i32, i32) {
    %c0_i32 = arith.constant 0 : i32
    %c0_i32_0 = arith.constant 0 : i32
    %c0_i32_1 = arith.constant 0 : i32
    return %arg0, %c0_i32, %c0_i32_0 : i32, i32, i32
  }
}

</mosaic_0001>

<llo_original>
// kernel: tpu_custom_call.1
$region0: #{tpu_custom_call.1}
  #allocation0 [shape = 'u32[]', space=smem, size = 0x4, offset = 0x4, fixed_abs, tag = 'smem constant byte address 0x4 - core index']
  #allocation1 [shape = 'u32[144,128]{1,0:T(1,128)}', space=vmem, size = 0x12000, scoped, tag = 'internal scratch']
  %s0 = inlined_call_operand.hbm [shape: f32[2,8,256], index: 0, kind: input, shape index: {}]
  %s1 = inlined_call_operand.hbm [shape: f32[8,256], index: 1, kind: input, shape index: {}]
  %s2 = inlined_call_operand.hbm [shape: f32[8,52], index: 2, kind: input, shape index: {}]
  %s3 = inlined_call_operand.hbm [shape: f32[2,8,256], index: 3, kind: output, shape index: {}]
  %s4 = sld [smem:[#allocation0]]
  $region57: #{tpu_custom_call.1} parent=0
    _
  %s6 = ssub.s32 1, %s4
  %s7 = scalar_select 0, %s6, %s4
  $region1: #{tpu_custom_call.1} parent=0
    #allocation2 [shape = 'u8[16384]{0}', space=vmem, size = 0x4000, scoped, tag = 'input window, operand 0']
    #allocation3 [shape = 's32[2]{0}', space=sflag, size = 0x8, scoped, tag = 'scoped memory for tpu_custom_call.1']
    #allocation4 [shape = 's32[2]{0}', space=sflag, size = 0x8, scoped, tag = 'scoped memory for tpu_custom_call.1']
    #allocation5 [shape = 'u8[8192]{0}', space=vmem, size = 0x2000, scoped, tag = 'input window, operand 1, single buffered']
    #allocation6 [shape = 's32[1]{0}', space=sflag, size = 0x4, scoped, tag = 'scoped memory for tpu_custom_call.1']
    #allocation7 [shape = 'u8[4096]{0}', space=vmem, size = 0x1000, scoped, tag = 'input window, operand 2, single buffered']
    #allocation8 [shape = 'u8[16384]{0}', space=vmem, size = 0x4000, scoped, tag = 'output window, operand 0']
    %8 = vsyncpa [#allocation3], 0
    %s9 = scalar_lea.sflag [#allocation3], 1
    %10 = vsyncpa %s9, 0
    %11 = vsyncpa [#allocation6], 0
    %12 = vsyncpa [#allocation4], 0
    %s13 = scalar_lea.sflag [#allocation4], 1
    %14 = vsyncpa %s13, 0
    loop: start=0, step=1, limit=4
    $region2: #{tpu_custom_call.1} parent=1 // loop_pre_header
      _
    $region3: #{tpu_custom_call.1} parent=1 // loop_header
      %s16 = sphi 0, %s20
      %p17 = scmp.ge.s32.totalorder %s16, 4
      %s26 = sphi 0, %s28
      %s29 = sphi 0, %s26
      %s30 = sphi 0, %s29
      %s46 = sphi 0, %s30
      %s50 = sphi 0, %s50
      %s52 = sphi 0, %s50
      %s53 = sphi 0, %s52
      %s67 = sphi 0, %s53
      %s71 = sphi 0, %s71
      %s73 = sphi 0, %s71
      %s74 = sphi 0, %s73
      %s88 = sphi 0, %s74
      %s94 = sphi 0, %s96
      %s97 = sphi 0, %s94
      %s98 = sphi 0, %s97
      %s114 = sphi 0, %s98
    $region4: #{tpu_custom_call.1} parent=1 // loop_header_branch
      %19 = sbr.rel (%p17) target = $region8
    $region5: #{tpu_custom_call.1} parent=1 // loop_body
      %s21 = ssub.s32 %s16, 1
      %s22 = ssub.s32 %s16, 2
      %s23 = sadd.s32 %s16, 1
      %s24 = ssub.s32 %s16, %s23
      %p25 = scmp.eq.s32.totalorder %s24, 0
      %s27 = sadd.s32 %s26, 1
      %s28 = scalar_select %p25, %s26, %s27
      %p31 = pneg %p25
      %p32 = scmp.eq.s32.totalorder %s16, 1
      %p33 = por %p31, %p32
      %p34 = scmp.ne.s32.totalorder %s26, %s29
      %p35 = scmp.eq.s32.totalorder %s16, 0
      %p36 = por %p34, %p35
      %p37 = scmp.ne.s32.totalorder %s26, %s29
      %p38 = scmp.eq.s32.totalorder %s21, 1
      %p39 = por %p37, %p38
      %p40 = scmp.ne.s32.totalorder %s29, %s30
      %p41 = scmp.eq.s32.totalorder %s21, 0
      %p42 = por %p40, %p41
      %p43 = scmp.ne.s32.totalorder %s29, %s30
      %p44 = scmp.eq.s32.totalorder %s22, 1
      %p45 = por %p43, %p44
      %p47 = scmp.ne.s32.totalorder %s30, %s46
      %p48 = scmp.eq.s32.totalorder %s22, 0
      %p49 = por %p47, %p48
      %s51 = sadd.s32 %s50, 1
      %p54 = scmp.eq.s32.totalorder %s16, 1
      %p55 = scmp.ne.s32.totalorder %s50, %s52
      %p56 = scmp.eq.s32.totalorder %s16, 0
      %p57 = por %p55, %p56
      %p58 = scmp.ne.s32.totalorder %s50, %s52
      %p59 = scmp.eq.s32.totalorder %s21, 1
      %p60 = por %p58, %p59
      %p61 = scmp.ne.s32.totalorder %s52, %s53
      %p62 = scmp.eq.s32.totalorder %s21, 0
      %p63 = por %p61, %p62
      %p64 = scmp.ne.s32.totalorder %s52, %s53
      %p65 = scmp.eq.s32.totalorder %s22, 1
      %p66 = por %p64, %p65
      %p68 = scmp.ne.s32.totalorder %s53, %s67
      %p69 = scmp.eq.s32.totalorder %s22, 0
      %p70 = por %p68, %p69
      %s72 = sadd.s32 %s71, 1
      %p75 = scmp.eq.s32.totalorder %s16, 1
      %p76 = scmp.ne.s32.totalorder %s71, %s73
      %p77 = scmp.eq.s32.totalorder %s16, 0
      %p78 = por %p76, %p77
      %p79 = scmp.ne.s32.totalorder %s71, %s73
      %p80 = scmp.eq.s32.totalorder %s21, 1
      %p81 = por %p79, %p80
      %p82 = scmp.ne.s32.totalorder %s73, %s74
      %p83 = scmp.eq.s32.totalorder %s21, 0
      %p84 = por %p82, %p83
      %p85 = scmp.ne.s32.totalorder %s73, %s74
      %p86 = scmp.eq.s32.totalorder %s22, 1
      %p87 = por %p85, %p86
      %p89 = scmp.ne.s32.totalorder %s74, %s88
      %p90 = scmp.eq.s32.totalorder %s22, 0
      %p91 = por %p89, %p90
      %s92 = ssub.s32 %s16, %s23
      %p93 = scmp.eq.s32.totalorder %s92, 0
      %s95 = sadd.s32 %s94, 1
      %s96 = scalar_select %p93, %s94, %s95
      %p99 = pneg %p93
      %p100 = scmp.eq.s32.totalorder %s16, 1
      %p101 = por %p99, %p100
      %p102 = scmp.ne.s32.totalorder %s94, %s97
      %p103 = scmp.eq.s32.totalorder %s16, 0
      %p104 = por %p102, %p103
      %p105 = scmp.ne.s32.totalorder %s94, %s97
      %p106 = scmp.eq.s32.totalorder %s21, 1
      %p107 = por %p105, %p106
      %p108 = scmp.ne.s32.totalorder %s97, %s98
      %p109 = scmp.eq.s32.totalorder %s21, 0
      %p110 = por %p108, %p109
      %p111 = scmp.ne.s32.totalorder %s97, %s98
      %p112 = scmp.eq.s32.totalorder %s22, 1
      %p113 = por %p111, %p112
      %p115 = scmp.ne.s32.totalorder %s98, %s114
      %p116 = scmp.eq.s32.totalorder %s22, 0
      %p117 = por %p115, %p116
      %p118 = scmp.le.s32.totalorder 1, %s16
      %p119 = scmp.lt.s32.totalorder %s16, 3
      %p120 = pnand %p118, %p119
      %p121 = pneg %p120
      // Predicated region
      $region9: #{tpu_custom_call.1} parent=5 // pred_check
        _
      $region10: #{tpu_custom_call.1} parent=5 // pred_check_branch
        %123 = sbr.rel (%p120) target = $region12
      $region11: #{tpu_custom_call.1} parent=5 // pred_region
        %s124 = ssub.s32 %s16, 1
        // Predicated region
        $region13: #{tpu_custom_call.1} parent=11 // pred_check
          %p125 = pneg %p63
        $region14: #{tpu_custom_call.1} parent=11 // pred_check_branch
          %127 = sbr.rel (%p125) target = $region16
        $region15: #{tpu_custom_call.1} parent=11 // pred_region
          %s129 = ssub.s32 256, 256
          %130 = vsyncadd [#allocation6], %s129
          %s132 = sshll.u32 [#allocation5], 4
          %s133 = int_to_ptr.vmem [resolvable:$true] %s132
          %135 = dma.hbm_to_vmem [thread:$0]  %s1, 256, %s133, [#allocation6]
        $region16: #{tpu_custom_call.1} parent=11 // pred_fallthru
          _
        // Predicated region
        $region17: #{tpu_custom_call.1} parent=11 // pred_check
          %p136 = pneg %p84
        $region18: #{tpu_custom_call.1} parent=11 // pred_check_branch
          %138 = sbr.rel (%p136) target = $region20
        $region19: #{tpu_custom_call.1} parent=11 // pred_region
          %s140 = ssub.s32 128, 128
          %141 = vsyncadd [#allocation6], %s140
          %s143 = sshll.u32 [#allocation7], 4
          %s144 = int_to_ptr.vmem [resolvable:$true] %s143
          %146 = dma.hbm_to_vmem [thread:$0]  %s2, 128, %s144, [#allocation6]
        $region20: #{tpu_custom_call.1} parent=11 // pred_fallthru
          _
      $region12: #{tpu_custom_call.1} parent=5 // pred_fallthru
        _
      %p147 = scmp.lt.s32.totalorder %s16, 2
      // Predicated region
      $region21: #{tpu_custom_call.1} parent=5 // pred_check
        %p148 = pneg %p147
      $region22: #{tpu_custom_call.1} parent=5 // pred_check_branch
        %150 = sbr.rel (%p148) target = $region24
      $region23: #{tpu_custom_call.1} parent=5 // pred_region
        // Predicated region
        $region25: #{tpu_custom_call.1} parent=23 // pred_check
          %p151 = pneg %p36
        $region26: #{tpu_custom_call.1} parent=23 // pred_check_branch
          %153 = sbr.rel (%p151) target = $region28
        $region27: #{tpu_custom_call.1} parent=23 // pred_region
          %s154 = sand.u32 %s26, 1
          %s155 = scalar_lea.sflag [#allocation3], %s154
          %s156 = sand.u32 %s26, 1
          %s157 = smul.addr %s156, 16
          %s158 = scalar_lea.vmem [#allocation2], %s157
          %s160 = ssub.s32 256, 256
          %161 = vsyncadd %s155, %s160
          %s162 = smul.addr %s16, 2
          %s163 = smul.addr %s162, 128
          %s164 = scalar_lea.hbm %s0, %s163
          %s166 = sshll.u32 %s158, 4
          %s167 = int_to_ptr.vmem [resolvable:$true] %s166
          %169 = dma.hbm_to_vmem [thread:$0]  %s164, 256, %s167, %s155
        $region28: #{tpu_custom_call.1} parent=23 // pred_fallthru
          _
      $region24: #{tpu_custom_call.1} parent=5 // pred_fallthru
        _
      %p170 = scmp.le.s32.totalorder 1, %s16
      %p171 = scmp.lt.s32.totalorder %s16, 3
      %p172 = pnand %p170, %p171
      %p173 = pneg %p172
      // Predicated region
      $region29: #{tpu_custom_call.1} parent=5 // pred_check
        _
      $region30: #{tpu_custom_call.1} parent=5 // pred_check_branch
        %175 = sbr.rel (%p172) target = $region32
      $region31: #{tpu_custom_call.1} parent=5 // pred_region
        %s176 = ssub.s32 %s16, 1
        %s177 = sand.u32 %s29, 1
        %s178 = scalar_lea.sflag [#allocation3], %s177
        %s179 = sand.u32 %s29, 1
        %s180 = smul.addr %s179, 16
        %s181 = scalar_lea.vmem [#allocation2], %s180
        // Predicated region
        $region33: #{tpu_custom_call.1} parent=31 // pred_check
          %p182 = pneg %p42
        $region34: #{tpu_custom_call.1} parent=31 // pred_check_branch
          %184 = sbr.rel (%p182) target = $region36
        $region35: #{tpu_custom_call.1} parent=31 // pred_region
          %185 = dma.done %s178, 256
        $region36: #{tpu_custom_call.1} parent=31 // pred_fallthru
          _
        // Predicated region
        $region37: #{tpu_custom_call.1} parent=31 // pred_check
          %p186 = pneg %p63
        $region38: #{tpu_custom_call.1} parent=31 // pred_check_branch
          %188 = sbr.rel (%p186) target = $region40
        $region39: #{tpu_custom_call.1} parent=31 // pred_region
          %189 = dma.done [#allocation6], 256
        $region40: #{tpu_custom_call.1} parent=31 // pred_fallthru
          _
        // Predicated region
        $region41: #{tpu_custom_call.1} parent=31 // pred_check
          %p190 = pneg %p84
        $region42: #{tpu_custom_call.1} parent=31 // pred_check_branch
          %192 = sbr.rel (%p190) target = $region44
        $region43: #{tpu_custom_call.1} parent=31 // pred_region
          %193 = dma.done [#allocation6], 128
        $region44: #{tpu_custom_call.1} parent=31 // pred_fallthru
          _
        %s194 = sand.u32 %s29, 1
        %s195 = scalar_lea.sflag [#allocation3], %s194
        %s196 = sand.u32 %s29, 1
        %s197 = smul.addr %s196, 16
        %s198 = scalar_lea.vmem [#allocation2], %s197
        %p199 = pneg %p42
        %p200 = pneg %p39
        %p201 = pneg %p63
        %p202 = pneg %p60
        %p203 = pneg %p84
        %p204 = pneg %p81
        %p205 = pneg %p110
        %p206 = pneg %p107
        %s207 = sand.u32 %s97, 1
        %s208 = scalar_lea.sflag [#allocation4], %s207
        %s209 = sand.u32 %s97, 1
        %s210 = smul.addr %s209, 16
        %s211 = scalar_lea.vmem [#allocation8], %s210
        %v212 = vld [vmem:[%s181] sm:$0xff]
        %v213 = vld [vmem:[%s181 + $0x8] sm:$0xff]
        %v214 = vld [vmem:[#allocation5] sm:$0xff]
        %v215 = vld [vmem:[#allocation5 + $0x8] sm:$0xff]
        %v216 = vld [vmem:[#allocation7] sm:$0xff]
        %217 = vrot.lane.b32.xlu0 %v212, 16
        %v218 = vpop.permute.xlu0 %217
        %219 = vrot.lane.b32.xlu0 %v213, 16
        %v220 = vpop.permute.xlu0 %219
        %v221 = vlaneseq
        %v222 = vand.u32 %v221, 127
        %vm223 = vcmp.lt.s32.totalorder %v222, 16
        %v224 = vsel %vm223, %v218, %v220
        %v225 = vsel %vm223, %v220, %v218
        %v226 = vlaneseq
        %v227 = vshrl.u32 %v226, 7
        %v228 = vsub.s32 0, %v227
        %v229 = vrot.slane %v214, %v228
        %v230 = vlaneseq
        %v231 = vshrl.u32 %v230, 7
        %v232 = vsub.s32 0, %v231
        %v233 = vrot.slane %v215, %v232
        %v234 = vmul.f32 %v225, %v229
        %v235 = vmul.f32 %v224, %v233
        %236 = vrot.lane.b32.xlu0 %v212, 112
        %v237 = vpop.permute.xlu0 %236
        %238 = vrot.lane.b32.xlu0 %v213, 112
        %v239 = vpop.permute.xlu0 %238
        %vm240 = vcmp.lt.s32.totalorder %v222, 112
        %v241 = vsel %vm240, %v237, %v239
        %v242 = vsel %vm240, %v239, %v237
        %v243 = vlaneseq
        %v244 = vshrl.u32 %v243, 7
        %v245 = vsub.s32 1, %v244
        %v246 = vrot.slane %v214, %v245
        %v247 = vlaneseq
        %v248 = vshrl.u32 %v247, 7
        %v249 = vsub.s32 1, %v248
        %v250 = vrot.slane %v215, %v249
        %v251 = vmul.f32 %v241, %v246
        %v252 = vmul.f32 %v242, %v250
        %254 = vset.pattern.permute.xlu0 0
        %255 = vperm.xlu0 %254, %v216
        %v256 = vpop.permute.xlu0 %255
        %v258 = vlaneseq
        %v259 = vshrl.u32 %v258, 7
        %v260 = vsub.s32 0, %v259
        %v261 = vrot.slane %v234, %v260
        %v262 = vlaneseq
        %v263 = vshrl.u32 %v262, 7
        %v264 = vsub.s32 0, %v263
        %v265 = vrot.slane %v235, %v264
        %v266 = vmul.f32 %v256, %v261
        %v267 = vmul.f32 %v256, %v265
        %268 = vset.pattern.permute.xlu0 48
        %269 = vperm.xlu0 %268, %v216
        %v270 = vpop.permute.xlu0 %269
        %v272 = vadd.f32 %v270, %v266
        %v273 = vadd.f32 %v270, %v267
        %274 = vset.pattern.permute.xlu0 1
        %275 = vperm.xlu0 %274, %v216
        %v276 = vpop.permute.xlu0 %275
        %v278 = vlaneseq
        %v279 = vshrl.u32 %v278, 7
        %v280 = vsub.s32 1, %v279
        %v281 = vrot.slane %v234, %v280
        %v282 = vlaneseq
        %v283 = vshrl.u32 %v282, 7
        %v284 = vsub.s32 1, %v283
        %v285 = vrot.slane %v235, %v284
        %v286 = vmul.f32 %v276, %v281
        %v287 = vmul.f32 %v276, %v285
        %v288 = vadd.f32 %v272, %v286
        %v289 = vadd.f32 %v273, %v287
        %290 = vset.pattern.permute.xlu0 2
        %291 = vperm.xlu0 %290, %v216
        %v292 = vpop.permute.xlu0 %291
        %v294 = vlaneseq
        %v295 = vshrl.u32 %v294, 7
        %v296 = vsub.s32 2, %v295
        %v297 = vrot.slane %v234, %v296
        %v298 = vlaneseq
        %v299 = vshrl.u32 %v298, 7
        %v300 = vsub.s32 2, %v299
        %v301 = vrot.slane %v235, %v300
        %v302 = vmul.f32 %v292, %v297
        %v303 = vmul.f32 %v292, %v301
        %v304 = vadd.f32 %v288, %v302
        %v305 = vadd.f32 %v289, %v303
        %306 = vset.pattern.permute.xlu0 3
        %307 = vperm.xlu0 %306, %v216
        %v308 = vpop.permute.xlu0 %307
        %v310 = vlaneseq
        %v311 = vshrl.u32 %v310, 7
        %v312 = vsub.s32 3, %v311
        %v313 = vrot.slane %v234, %v312
        %v314 = vlaneseq
        %v315 = vshrl.u32 %v314, 7
        %v316 = vsub.s32 3, %v315
        %v317 = vrot.slane %v235, %v316
        %v318 = vmul.f32 %v308, %v313
        %v319 = vmul.f32 %v308, %v317
        %v320 = vadd.f32 %v304, %v318
        %v321 = vadd.f32 %v305, %v319
        %322 = vset.pattern.permute.xlu0 4
        %323 = vperm.xlu0 %322, %v216
        %v324 = vpop.permute.xlu0 %323
        %v326 = vlaneseq
        %v327 = vshrl.u32 %v326, 7
        %v328 = vsub.s32 0, %v327
        %v329 = vrot.slane %v212, %v328
        %v330 = vlaneseq
        %v331 = vshrl.u32 %v330, 7
        %v332 = vsub.s32 0, %v331
        %v333 = vrot.slane %v213, %v332
        %v334 = vmul.f32 %v324, %v329
        %v335 = vmul.f32 %v324, %v333
        %v336 = vadd.f32 %v320, %v334
        %v337 = vadd.f32 %v321, %v335
        %338 = vset.pattern.permute.xlu0 5
        %339 = vperm.xlu0 %338, %v216
        %v340 = vpop.permute.xlu0 %339
        %v342 = vlaneseq
        %v343 = vshrl.u32 %v342, 7
        %v344 = vsub.s32 1, %v343
        %v345 = vrot.slane %v212, %v344
        %v346 = vlaneseq
        %v347 = vshrl.u32 %v346, 7
        %v348 = vsub.s32 1, %v347
        %v349 = vrot.slane %v213, %v348
        %v350 = vmul.f32 %v340, %v345
        %v351 = vmul.f32 %v340, %v349
        %v352 = vadd.f32 %v336, %v350
        %v353 = vadd.f32 %v337, %v351
        %354 = vset.pattern.permute.xlu0 6
        %355 = vperm.xlu0 %354, %v216
        %v356 = vpop.permute.xlu0 %355
        %v358 = vlaneseq
        %v359 = vshrl.u32 %v358, 7
        %v360 = vsub.s32 2, %v359
        %v361 = vrot.slane %v212, %v360
        %v362 = vlaneseq
        %v363 = vshrl.u32 %v362, 7
        %v364 = vsub.s32 2, %v363
        %v365 = vrot.slane %v213, %v364
        %v366 = vmul.f32 %v356, %v361
        %v367 = vmul.f32 %v356, %v365
        %v368 = vadd.f32 %v352, %v366
        %v369 = vadd.f32 %v353, %v367
        %370 = vset.pattern.permute.xlu0 7
        %371 = vperm.xlu0 %370, %v216
        %v372 = vpop.permute.xlu0 %371
        %v374 = vlaneseq
        %v375 = vshrl.u32 %v374, 7
        %v376 = vsub.s32 3, %v375
        %v377 = vrot.slane %v212, %v376
        %v378 = vlaneseq
        %v379 = vshrl.u32 %v378, 7
        %v380 = vsub.s32 3, %v379
        %v381 = vrot.slane %v213, %v380
        %v382 = vmul.f32 %v372, %v377
        %v383 = vmul.f32 %v372, %v381
        %v384 = vadd.f32 %v368, %v382
        %v385 = vadd.f32 %v369, %v383
        %386 = vset.pattern.permute.xlu0 8
        %387 = vperm.xlu0 %386, %v216
        %v388 = vpop.permute.xlu0 %387
        %v390 = vlaneseq
        %v391 = vshrl.u32 %v390, 7
        %v392 = vsub.s32 0, %v391
        %v393 = vrot.slane %v251, %v392
        %v394 = vlaneseq
        %v395 = vshrl.u32 %v394, 7
        %v396 = vsub.s32 0, %v395
        %v397 = vrot.slane %v252, %v396
        %v398 = vmul.f32 %v388, %v393
        %v399 = vmul.f32 %v388, %v397
        %v400 = vadd.f32 %v384, %v398
        %v401 = vadd.f32 %v385, %v399
        %402 = vset.pattern.permute.xlu0 9
        %403 = vperm.xlu0 %402, %v216
        %v404 = vpop.permute.xlu0 %403
        %v406 = vlaneseq
        %v407 = vshrl.u32 %v406, 7
        %v408 = vsub.s32 1, %v407
        %v409 = vrot.slane %v251, %v408
        %v410 = vlaneseq
        %v411 = vshrl.u32 %v410, 7
        %v412 = vsub.s32 1, %v411
        %v413 = vrot.slane %v252, %v412
        %v414 = vmul.f32 %v404, %v409
        %v415 = vmul.f32 %v404, %v413
        %v416 = vadd.f32 %v400, %v414
        %v417 = vadd.f32 %v401, %v415
        %418 = vset.pattern.permute.xlu0 10
        %419 = vperm.xlu0 %418, %v216
        %v420 = vpop.permute.xlu0 %419
        %v422 = vlaneseq
        %v423 = vshrl.u32 %v422, 7
        %v424 = vsub.s32 2, %v423
        %v425 = vrot.slane %v251, %v424
        %v426 = vlaneseq
        %v427 = vshrl.u32 %v426, 7
        %v428 = vsub.s32 2, %v427
        %v429 = vrot.slane %v252, %v428
        %v430 = vmul.f32 %v420, %v425
        %v431 = vmul.f32 %v420, %v429
        %v432 = vadd.f32 %v416, %v430
        %v433 = vadd.f32 %v417, %v431
        %434 = vset.pattern.permute.xlu0 11
        %435 = vperm.xlu0 %434, %v216
        %v436 = vpop.permute.xlu0 %435
        %v438 = vlaneseq
        %v439 = vshrl.u32 %v438, 7
        %v440 = vsub.s32 3, %v439
        %v441 = vrot.slane %v251, %v440
        %v442 = vlaneseq
        %v443 = vshrl.u32 %v442, 7
        %v444 = vsub.s32 3, %v443
        %v445 = vrot.slane %v252, %v444
        %v446 = vmul.f32 %v436, %v441
        %v447 = vmul.f32 %v436, %v445
        %v448 = vadd.f32 %v432, %v446
        %v449 = vadd.f32 %v433, %v447
        %v450 = vmax.f32 %v448, 0.0
        %v451 = vmax.f32 %v449, 0.0
        %452 = vrot.lane.b32.xlu0 %v450, 1
        %v453 = vpop.permute.xlu0 %452
        %454 = vrot.lane.b32.xlu0 %v451, 1
        %v455 = vpop.permute.xlu0 %454
        %vm456 = vcmp.lt.s32.totalorder %v222, 1
        %v457 = vsel %vm456, %v453, %v455
        %v458 = vsel %vm456, %v455, %v453
        %v459 = vlaneseq
        %v460 = vshrl.u32 %v459, 7
        %v461 = vsub.s32 2, %v460
        %v462 = vrot.slane %v214, %v461
        %v463 = vlaneseq
        %v464 = vshrl.u32 %v463, 7
        %v465 = vsub.s32 2, %v464
        %v466 = vrot.slane %v215, %v465
        %v467 = vmul.f32 %v458, %v462
        %v468 = vmul.f32 %v457, %v466
        %469 = vrot.lane.b32.xlu0 %v450, 127
        %v470 = vpop.permute.xlu0 %469
        %471 = vrot.lane.b32.xlu0 %v451, 127
        %v472 = vpop.permute.xlu0 %471
        %vm473 = vcmp.lt.s32.totalorder %v222, 127
        %v474 = vsel %vm473, %v470, %v472
        %v475 = vsel %vm473, %v472, %v470
        %v476 = vlaneseq
        %v477 = vshrl.u32 %v476, 7
        %v478 = vsub.s32 3, %v477
        %v479 = vrot.slane %v214, %v478
        %v480 = vlaneseq
        %v481 = vshrl.u32 %v480, 7
        %v482 = vsub.s32 3, %v481
        %v483 = vrot.slane %v215, %v482
        %v484 = vmul.f32 %v474, %v479
        %v485 = vmul.f32 %v475, %v483
        %486 = vset.pattern.permute.xlu0 12
        %487 = vperm.xlu0 %486, %v216
        %v488 = vpop.permute.xlu0 %487
        %v490 = vlaneseq
        %v491 = vshrl.u32 %v490, 7
        %v492 = vsub.s32 0, %v491
        %v493 = vrot.slane %v467, %v492
        %v494 = vlaneseq
        %v495 = vshrl.u32 %v494, 7
        %v496 = vsub.s32 0, %v495
        %v497 = vrot.slane %v468, %v496
        %v498 = vmul.f32 %v488, %v493
        %v499 = vmul.f32 %v488, %v497
        %500 = vset.pattern.permute.xlu0 49
        %501 = vperm.xlu0 %500, %v216
        %v502 = vpop.permute.xlu0 %501
        %v504 = vadd.f32 %v502, %v498
        %v505 = vadd.f32 %v502, %v499
        %506 = vset.pattern.permute.xlu0 13
        %507 = vperm.xlu0 %506, %v216
        %v508 = vpop.permute.xlu0 %507
        %v510 = vlaneseq
        %v511 = vshrl.u32 %v510, 7
        %v512 = vsub.s32 1, %v511
        %v513 = vrot.slane %v467, %v512
        %v514 = vlaneseq
        %v515 = vshrl.u32 %v514, 7
        %v516 = vsub.s32 1, %v515
        %v517 = vrot.slane %v468, %v516
        %v518 = vmul.f32 %v508, %v513
        %v519 = vmul.f32 %v508, %v517
        %v520 = vadd.f32 %v504, %v518
        %v521 = vadd.f32 %v505, %v519
        %522 = vset.pattern.permute.xlu0 14
        %523 = vperm.xlu0 %522, %v216
        %v524 = vpop.permute.xlu0 %523
        %v526 = vlaneseq
        %v527 = vshrl.u32 %v526, 7
        %v528 = vsub.s32 2, %v527
        %v529 = vrot.slane %v467, %v528
        %v530 = vlaneseq
        %v531 = vshrl.u32 %v530, 7
        %v532 = vsub.s32 2, %v531
        %v533 = vrot.slane %v468, %v532
        %v534 = vmul.f32 %v524, %v529
        %v535 = vmul.f32 %v524, %v533
        %v536 = vadd.f32 %v520, %v534
        %v537 = vadd.f32 %v521, %v535
        %538 = vset.pattern.permute.xlu0 15
        %539 = vperm.xlu0 %538, %v216
        %v540 = vpop.permute.xlu0 %539
        %v542 = vlaneseq
        %v543 = vshrl.u32 %v542, 7
        %v544 = vsub.s32 3, %v543
        %v545 = vrot.slane %v467, %v544
        %v546 = vlaneseq
        %v547 = vshrl.u32 %v546, 7
        %v548 = vsub.s32 3, %v547
        %v549 = vrot.slane %v468, %v548
        %v550 = vmul.f32 %v540, %v545
        %v551 = vmul.f32 %v540, %v549
        %v552 = vadd.f32 %v536, %v550
        %v553 = vadd.f32 %v537, %v551
        %554 = vset.pattern.permute.xlu0 16
        %555 = vperm.xlu0 %554, %v216
        %v556 = vpop.permute.xlu0 %555
        %v558 = vlaneseq
        %v559 = vshrl.u32 %v558, 7
        %v560 = vsub.s32 0, %v559
        %v561 = vrot.slane %v450, %v560
        %v562 = vlaneseq
        %v563 = vshrl.u32 %v562, 7
        %v564 = vsub.s32 0, %v563
        %v565 = vrot.slane %v451, %v564
        %v566 = vmul.f32 %v556, %v561
        %v567 = vmul.f32 %v556, %v565
        %v568 = vadd.f32 %v552, %v566
        %v569 = vadd.f32 %v553, %v567
        %570 = vset.pattern.permute.xlu0 17
        %571 = vperm.xlu0 %570, %v216
        %v572 = vpop.permute.xlu0 %571
        %v574 = vlaneseq
        %v575 = vshrl.u32 %v574, 7
        %v576 = vsub.s32 1, %v575
        %v577 = vrot.slane %v450, %v576
        %v578 = vlaneseq
        %v579 = vshrl.u32 %v578, 7
        %v580 = vsub.s32 1, %v579
        %v581 = vrot.slane %v451, %v580
        %v582 = vmul.f32 %v572, %v577
        %v583 = vmul.f32 %v572, %v581
        %v584 = vadd.f32 %v568, %v582
        %v585 = vadd.f32 %v569, %v583
        %586 = vset.pattern.permute.xlu0 18
        %587 = vperm.xlu0 %586, %v216
        %v588 = vpop.permute.xlu0 %587
        %v590 = vlaneseq
        %v591 = vshrl.u32 %v590, 7
        %v592 = vsub.s32 2, %v591
        %v593 = vrot.slane %v450, %v592
        %v594 = vlaneseq
        %v595 = vshrl.u32 %v594, 7
        %v596 = vsub.s32 2, %v595
        %v597 = vrot.slane %v451, %v596
        %v598 = vmul.f32 %v588, %v593
        %v599 = vmul.f32 %v588, %v597
        %v600 = vadd.f32 %v584, %v598
        %v601 = vadd.f32 %v585, %v599
        %602 = vset.pattern.permute.xlu0 19
        %603 = vperm.xlu0 %602, %v216
        %v604 = vpop.permute.xlu0 %603
        %v606 = vlaneseq
        %v607 = vshrl.u32 %v606, 7
        %v608 = vsub.s32 3, %v607
        %v609 = vrot.slane %v450, %v608
        %v610 = vlaneseq
        %v611 = vshrl.u32 %v610, 7
        %v612 = vsub.s32 3, %v611
        %v613 = vrot.slane %v451, %v612
        %v614 = vmul.f32 %v604, %v609
        %v615 = vmul.f32 %v604, %v613
        %v616 = vadd.f32 %v600, %v614
        %v617 = vadd.f32 %v601, %v615
        %618 = vset.pattern.permute.xlu0 20
        %619 = vperm.xlu0 %618, %v216
        %v620 = vpop.permute.xlu0 %619
        %v622 = vlaneseq
        %v623 = vshrl.u32 %v622, 7
        %v624 = vsub.s32 0, %v623
        %v625 = vrot.slane %v484, %v624
        %v626 = vlaneseq
        %v627 = vshrl.u32 %v626, 7
        %v628 = vsub.s32 0, %v627
        %v629 = vrot.slane %v485, %v628
        %v630 = vmul.f32 %v620, %v625
        %v631 = vmul.f32 %v620, %v629
        %v632 = vadd.f32 %v616, %v630
        %v633 = vadd.f32 %v617, %v631
        %634 = vset.pattern.permute.xlu0 21
        %635 = vperm.xlu0 %634, %v216
        %v636 = vpop.permute.xlu0 %635
        %v638 = vlaneseq
        %v639 = vshrl.u32 %v638, 7
        %v640 = vsub.s32 1, %v639
        %v641 = vrot.slane %v484, %v640
        %v642 = vlaneseq
        %v643 = vshrl.u32 %v642, 7
        %v644 = vsub.s32 1, %v643
        %v645 = vrot.slane %v485, %v644
        %v646 = vmul.f32 %v636, %v641
        %v647 = vmul.f32 %v636, %v645
        %v648 = vadd.f32 %v632, %v646
        %v649 = vadd.f32 %v633, %v647
        %650 = vset.pattern.permute.xlu0 22
        %651 = vperm.xlu0 %650, %v216
        %v652 = vpop.permute.xlu0 %651
        %v654 = vlaneseq
        %v655 = vshrl.u32 %v654, 7
        %v656 = vsub.s32 2, %v655
        %v657 = vrot.slane %v484, %v656
        %v658 = vlaneseq
        %v659 = vshrl.u32 %v658, 7
        %v660 = vsub.s32 2, %v659
        %v661 = vrot.slane %v485, %v660
        %v662 = vmul.f32 %v652, %v657
        %v663 = vmul.f32 %v652, %v661
        %v664 = vadd.f32 %v648, %v662
        %v665 = vadd.f32 %v649, %v663
        %666 = vset.pattern.permute.xlu0 23
        %667 = vperm.xlu0 %666, %v216
        %v668 = vpop.permute.xlu0 %667
        %v670 = vlaneseq
        %v671 = vshrl.u32 %v670, 7
        %v672 = vsub.s32 3, %v671
        %v673 = vrot.slane %v484, %v672
        %v674 = vlaneseq
        %v675 = vshrl.u32 %v674, 7
        %v676 = vsub.s32 3, %v675
        %v677 = vrot.slane %v485, %v676
        %v678 = vmul.f32 %v668, %v673
        %v679 = vmul.f32 %v668, %v677
        %v680 = vadd.f32 %v664, %v678
        %v681 = vadd.f32 %v665, %v679
        %v682 = vmax.f32 %v680, 0.0
        %v683 = vmax.f32 %v681, 0.0
        %684 = vrot.lane.b32.xlu0 %v682, 32
        %v685 = vpop.permute.xlu0 %684
        %686 = vrot.lane.b32.xlu0 %v683, 32
        %v687 = vpop.permute.xlu0 %686
        %vm688 = vcmp.lt.s32.totalorder %v222, 32
        %v689 = vsel %vm688, %v685, %v687
        %v690 = vsel %vm688, %v687, %v685
        %v691 = vlaneseq
        %v692 = vshrl.u32 %v691, 7
        %v693 = vsub.s32 4, %v692
        %v694 = vrot.slane %v214, %v693
        %v695 = vlaneseq
        %v696 = vshrl.u32 %v695, 7
        %v697 = vsub.s32 4, %v696
        %v698 = vrot.slane %v215, %v697
        %v699 = vmul.f32 %v690, %v694
        %v700 = vmul.f32 %v689, %v698
        %701 = vrot.lane.b32.xlu0 %v682, 96
        %v702 = vpop.permute.xlu0 %701
        %703 = vrot.lane.b32.xlu0 %v683, 96
        %v704 = vpop.permute.xlu0 %703
        %vm705 = vcmp.lt.s32.totalorder %v222, 96
        %v706 = vsel %vm705, %v702, %v704
        %v707 = vsel %vm705, %v704, %v702
        %v708 = vlaneseq
        %v709 = vshrl.u32 %v708, 7
        %v710 = vsub.s32 5, %v709
        %v711 = vrot.slane %v214, %v710
        %v712 = vlaneseq
        %v713 = vshrl.u32 %v712, 7
        %v714 = vsub.s32 5, %v713
        %v715 = vrot.slane %v215, %v714
        %v716 = vmul.f32 %v706, %v711
        %v717 = vmul.f32 %v707, %v715
        %718 = vset.pattern.permute.xlu0 24
        %719 = vperm.xlu0 %718, %v216
        %v720 = vpop.permute.xlu0 %719
        %v722 = vlaneseq
        %v723 = vshrl.u32 %v722, 7
        %v724 = vsub.s32 0, %v723
        %v725 = vrot.slane %v699, %v724
        %v726 = vlaneseq
        %v727 = vshrl.u32 %v726, 7
        %v728 = vsub.s32 0, %v727
        %v729 = vrot.slane %v700, %v728
        %v730 = vmul.f32 %v720, %v725
        %v731 = vmul.f32 %v720, %v729
        %732 = vset.pattern.permute.xlu0 50
        %733 = vperm.xlu0 %732, %v216
        %v734 = vpop.permute.xlu0 %733
        %v736 = vadd.f32 %v734, %v730
        %v737 = vadd.f32 %v734, %v731
        %738 = vset.pattern.permute.xlu0 25
        %739 = vperm.xlu0 %738, %v216
        %v740 = vpop.permute.xlu0 %739
        %v742 = vlaneseq
        %v743 = vshrl.u32 %v742, 7
        %v744 = vsub.s32 1, %v743
        %v745 = vrot.slane %v699, %v744
        %v746 = vlaneseq
        %v747 = vshrl.u32 %v746, 7
        %v748 = vsub.s32 1, %v747
        %v749 = vrot.slane %v700, %v748
        %v750 = vmul.f32 %v740, %v745
        %v751 = vmul.f32 %v740, %v749
        %v752 = vadd.f32 %v736, %v750
        %v753 = vadd.f32 %v737, %v751
        %754 = vset.pattern.permute.xlu0 26
        %755 = vperm.xlu0 %754, %v216
        %v756 = vpop.permute.xlu0 %755
        %v758 = vlaneseq
        %v759 = vshrl.u32 %v758, 7
        %v760 = vsub.s32 2, %v759
        %v761 = vrot.slane %v699, %v760
        %v762 = vlaneseq
        %v763 = vshrl.u32 %v762, 7
        %v764 = vsub.s32 2, %v763
        %v765 = vrot.slane %v700, %v764
        %v766 = vmul.f32 %v756, %v761
        %v767 = vmul.f32 %v756, %v765
        %v768 = vadd.f32 %v752, %v766
        %v769 = vadd.f32 %v753, %v767
        %770 = vset.pattern.permute.xlu0 27
        %771 = vperm.xlu0 %770, %v216
        %v772 = vpop.permute.xlu0 %771
        %v774 = vlaneseq
        %v775 = vshrl.u32 %v774, 7
        %v776 = vsub.s32 3, %v775
        %v777 = vrot.slane %v699, %v776
        %v778 = vlaneseq
        %v779 = vshrl.u32 %v778, 7
        %v780 = vsub.s32 3, %v779
        %v781 = vrot.slane %v700, %v780
        %v782 = vmul.f32 %v772, %v777
        %v783 = vmul.f32 %v772, %v781
        %v784 = vadd.f32 %v768, %v782
        %v785 = vadd.f32 %v769, %v783
        %786 = vset.pattern.permute.xlu0 28
        %787 = vperm.xlu0 %786, %v216
        %v788 = vpop.permute.xlu0 %787
        %v790 = vlaneseq
        %v791 = vshrl.u32 %v790, 7
        %v792 = vsub.s32 0, %v791
        %v793 = vrot.slane %v682, %v792
        %v794 = vlaneseq
        %v795 = vshrl.u32 %v794, 7
        %v796 = vsub.s32 0, %v795
        %v797 = vrot.slane %v683, %v796
        %v798 = vmul.f32 %v788, %v793
        %v799 = vmul.f32 %v788, %v797
        %v800 = vadd.f32 %v784, %v798
        %v801 = vadd.f32 %v785, %v799
        %802 = vset.pattern.permute.xlu0 29
        %803 = vperm.xlu0 %802, %v216
        %v804 = vpop.permute.xlu0 %803
        %v806 = vlaneseq
        %v807 = vshrl.u32 %v806, 7
        %v808 = vsub.s32 1, %v807
        %v809 = vrot.slane %v682, %v808
        %v810 = vlaneseq
        %v811 = vshrl.u32 %v810, 7
        %v812 = vsub.s32 1, %v811
        %v813 = vrot.slane %v683, %v812
        %v814 = vmul.f32 %v804, %v809
        %v815 = vmul.f32 %v804, %v813
        %v816 = vadd.f32 %v800, %v814
        %v817 = vadd.f32 %v801, %v815
        %818 = vset.pattern.permute.xlu0 30
        %819 = vperm.xlu0 %818, %v216
        %v820 = vpop.permute.xlu0 %819
        %v822 = vlaneseq
        %v823 = vshrl.u32 %v822, 7
        %v824 = vsub.s32 2, %v823
        %v825 = vrot.slane %v682, %v824
        %v826 = vlaneseq
        %v827 = vshrl.u32 %v826, 7
        %v828 = vsub.s32 2, %v827
        %v829 = vrot.slane %v683, %v828
        %v830 = vmul.f32 %v820, %v825
        %v831 = vmul.f32 %v820, %v829
        %v832 = vadd.f32 %v816, %v830
        %v833 = vadd.f32 %v817, %v831
        %834 = vset.pattern.permute.xlu0 31
        %835 = vperm.xlu0 %834, %v216
        %v836 = vpop.permute.xlu0 %835
        %v838 = vlaneseq
        %v839 = vshrl.u32 %v838, 7
        %v840 = vsub.s32 3, %v839
        %v841 = vrot.slane %v682, %v840
        %v842 = vlaneseq
        %v843 = vshrl.u32 %v842, 7
        %v844 = vsub.s32 3, %v843
        %v845 = vrot.slane %v683, %v844
        %v846 = vmul.f32 %v836, %v841
        %v847 = vmul.f32 %v836, %v845
        %v848 = vadd.f32 %v832, %v846
        %v849 = vadd.f32 %v833, %v847
        %850 = vset.pattern.permute.xlu0 32
        %851 = vperm.xlu0 %850, %v216
        %v852 = vpop.permute.xlu0 %851
        %v854 = vlaneseq
        %v855 = vshrl.u32 %v854, 7
        %v856 = vsub.s32 0, %v855
        %v857 = vrot.slane %v716, %v856
        %v858 = vlaneseq
        %v859 = vshrl.u32 %v858, 7
        %v860 = vsub.s32 0, %v859
        %v861 = vrot.slane %v717, %v860
        %v862 = vmul.f32 %v852, %v857
        %v863 = vmul.f32 %v852, %v861
        %v864 = vadd.f32 %v848, %v862
        %v865 = vadd.f32 %v849, %v863
        %866 = vset.pattern.permute.xlu0 33
        %867 = vperm.xlu0 %866, %v216
        %v868 = vpop.permute.xlu0 %867
        %v870 = vlaneseq
        %v871 = vshrl.u32 %v870, 7
        %v872 = vsub.s32 1, %v871
        %v873 = vrot.slane %v716, %v872
        %v874 = vlaneseq
        %v875 = vshrl.u32 %v874, 7
        %v876 = vsub.s32 1, %v875
        %v877 = vrot.slane %v717, %v876
        %v878 = vmul.f32 %v868, %v873
        %v879 = vmul.f32 %v868, %v877
        %v880 = vadd.f32 %v864, %v878
        %v881 = vadd.f32 %v865, %v879
        %882 = vset.pattern.permute.xlu0 34
        %883 = vperm.xlu0 %882, %v216
        %v884 = vpop.permute.xlu0 %883
        %v886 = vlaneseq
        %v887 = vshrl.u32 %v886, 7
        %v888 = vsub.s32 2, %v887
        %v889 = vrot.slane %v716, %v888
        %v890 = vlaneseq
        %v891 = vshrl.u32 %v890, 7
        %v892 = vsub.s32 2, %v891
        %v893 = vrot.slane %v717, %v892
        %v894 = vmul.f32 %v884, %v889
        %v895 = vmul.f32 %v884, %v893
        %v896 = vadd.f32 %v880, %v894
        %v897 = vadd.f32 %v881, %v895
        %898 = vset.pattern.permute.xlu0 35
        %899 = vperm.xlu0 %898, %v216
        %v900 = vpop.permute.xlu0 %899
        %v902 = vlaneseq
        %v903 = vshrl.u32 %v902, 7
        %v904 = vsub.s32 3, %v903
        %v905 = vrot.slane %v716, %v904
        %v906 = vlaneseq
        %v907 = vshrl.u32 %v906, 7
        %v908 = vsub.s32 3, %v907
        %v909 = vrot.slane %v717, %v908
        %v910 = vmul.f32 %v900, %v905
        %v911 = vmul.f32 %v900, %v909
        %v912 = vadd.f32 %v896, %v910
        %v913 = vadd.f32 %v897, %v911
        %v914 = vmax.f32 %v912, 0.0
        %v915 = vmax.f32 %v913, 0.0
        %916 = vrot.lane.b32.xlu0 %v914, 2
        %v917 = vpop.permute.xlu0 %916
        %918 = vrot.lane.b32.xlu0 %v915, 2
        %v919 = vpop.permute.xlu0 %918
        %vm920 = vcmp.lt.s32.totalorder %v222, 2
        %v921 = vsel %vm920, %v917, %v919
        %v922 = vsel %vm920, %v919, %v917
        %v923 = vlaneseq
        %v924 = vshrl.u32 %v923, 7
        %v925 = vsub.s32 6, %v924
        %v926 = vrot.slane %v214, %v925
        %v927 = vlaneseq
        %v928 = vshrl.u32 %v927, 7
        %v929 = vsub.s32 6, %v928
        %v930 = vrot.slane %v215, %v929
        %v931 = vmul.f32 %v922, %v926
        %v932 = vmul.f32 %v921, %v930
        %933 = vrot.lane.b32.xlu0 %v914, 126
        %v934 = vpop.permute.xlu0 %933
        %935 = vrot.lane.b32.xlu0 %v915, 126
        %v936 = vpop.permute.xlu0 %935
        %vm937 = vcmp.lt.s32.totalorder %v222, 126
        %v938 = vsel %vm937, %v934, %v936
        %v939 = vsel %vm937, %v936, %v934
        %v940 = vlaneseq
        %v941 = vshrl.u32 %v940, 7
        %v942 = vsub.s32 7, %v941
        %v943 = vrot.slane %v214, %v942
        %v944 = vlaneseq
        %v945 = vshrl.u32 %v944, 7
        %v946 = vsub.s32 7, %v945
        %v947 = vrot.slane %v215, %v946
        %v948 = vmul.f32 %v938, %v943
        %v949 = vmul.f32 %v939, %v947
        %950 = vset.pattern.permute.xlu0 36
        %951 = vperm.xlu0 %950, %v216
        %v952 = vpop.permute.xlu0 %951
        %v954 = vlaneseq
        %v955 = vshrl.u32 %v954, 7
        %v956 = vsub.s32 0, %v955
        %v957 = vrot.slane %v931, %v956
        %v958 = vlaneseq
        %v959 = vshrl.u32 %v958, 7
        %v960 = vsub.s32 0, %v959
        %v961 = vrot.slane %v932, %v960
        %v962 = vmul.f32 %v952, %v957
        %v963 = vmul.f32 %v952, %v961
        %964 = vset.pattern.permute.xlu0 51
        %965 = vperm.xlu0 %964, %v216
        %v966 = vpop.permute.xlu0 %965
        %v968 = vadd.f32 %v966, %v962
        %v969 = vadd.f32 %v966, %v963
        %970 = vset.pattern.permute.xlu0 37
        %971 = vperm.xlu0 %970, %v216
        %v972 = vpop.permute.xlu0 %971
        %v974 = vlaneseq
        %v975 = vshrl.u32 %v974, 7
        %v976 = vsub.s32 1, %v975
        %v977 = vrot.slane %v931, %v976
        %v978 = vlaneseq
        %v979 = vshrl.u32 %v978, 7
        %v980 = vsub.s32 1, %v979
        %v981 = vrot.slane %v932, %v980
        %v982 = vmul.f32 %v972, %v977
        %v983 = vmul.f32 %v972, %v981
        %v984 = vadd.f32 %v968, %v982
        %v985 = vadd.f32 %v969, %v983
        %986 = vset.pattern.permute.xlu0 38
        %987 = vperm.xlu0 %986, %v216
        %v988 = vpop.permute.xlu0 %987
        %v990 = vlaneseq
        %v991 = vshrl.u32 %v990, 7
        %v992 = vsub.s32 2, %v991
        %v993 = vrot.slane %v931, %v992
        %v994 = vlaneseq
        %v995 = vshrl.u32 %v994, 7
        %v996 = vsub.s32 2, %v995
        %v997 = vrot.slane %v932, %v996
        %v998 = vmul.f32 %v988, %v993
        %v999 = vmul.f32 %v988, %v997
        %v1000 = vadd.f32 %v984, %v998
        %v1001 = vadd.f32 %v985, %v999
        %1002 = vset.pattern.permute.xlu0 39
        %1003 = vperm.xlu0 %1002, %v216
        %v1004 = vpop.permute.xlu0 %1003
        %v1006 = vlaneseq
        %v1007 = vshrl.u32 %v1006, 7
        %v1008 = vsub.s32 3, %v1007
        %v1009 = vrot.slane %v931, %v1008
        %v1010 = vlaneseq
        %v1011 = vshrl.u32 %v1010, 7
        %v1012 = vsub.s32 3, %v1011
        %v1013 = vrot.slane %v932, %v1012
        %v1014 = vmul.f32 %v1004, %v1009
        %v1015 = vmul.f32 %v1004, %v1013
        %v1016 = vadd.f32 %v1000, %v1014
        %v1017 = vadd.f32 %v1001, %v1015
        %1018 = vset.pattern.permute.xlu0 40
        %1019 = vperm.xlu0 %1018, %v216
        %v1020 = vpop.permute.xlu0 %1019
        %v1022 = vlaneseq
        %v1023 = vshrl.u32 %v1022, 7
        %v1024 = vsub.s32 0, %v1023
        %v1025 = vrot.slane %v914, %v1024
        %v1026 = vlaneseq
        %v1027 = vshrl.u32 %v1026, 7
        %v1028 = vsub.s32 0, %v1027
        %v1029 = vrot.slane %v915, %v1028
        %v1030 = vmul.f32 %v1020, %v1025
        %v1031 = vmul.f32 %v1020, %v1029
        %v1032 = vadd.f32 %v1016, %v1030
        %v1033 = vadd.f32 %v1017, %v1031
        %1034 = vset.pattern.permute.xlu0 41
        %1035 = vperm.xlu0 %1034, %v216
        %v1036 = vpop.permute.xlu0 %1035
        %v1038 = vlaneseq
        %v1039 = vshrl.u32 %v1038, 7
        %v1040 = vsub.s32 1, %v1039
        %v1041 = vrot.slane %v914, %v1040
        %v1042 = vlaneseq
        %v1043 = vshrl.u32 %v1042, 7
        %v1044 = vsub.s32 1, %v1043
        %v1045 = vrot.slane %v915, %v1044
        %v1046 = vmul.f32 %v1036, %v1041
        %v1047 = vmul.f32 %v1036, %v1045
        %v1048 = vadd.f32 %v1032, %v1046
        %v1049 = vadd.f32 %v1033, %v1047
        %1050 = vset.pattern.permute.xlu0 42
        %1051 = vperm.xlu0 %1050, %v216
        %v1052 = vpop.permute.xlu0 %1051
        %v1054 = vlaneseq
        %v1055 = vshrl.u32 %v1054, 7
        %v1056 = vsub.s32 2, %v1055
        %v1057 = vrot.slane %v914, %v1056
        %v1058 = vlaneseq
        %v1059 = vshrl.u32 %v1058, 7
        %v1060 = vsub.s32 2, %v1059
        %v1061 = vrot.slane %v915, %v1060
        %v1062 = vmul.f32 %v1052, %v1057
        %v1063 = vmul.f32 %v1052, %v1061
        %v1064 = vadd.f32 %v1048, %v1062
        %v1065 = vadd.f32 %v1049, %v1063
        %1066 = vset.pattern.permute.xlu0 43
        %1067 = vperm.xlu0 %1066, %v216
        %v1068 = vpop.permute.xlu0 %1067
        %v1070 = vlaneseq
        %v1071 = vshrl.u32 %v1070, 7
        %v1072 = vsub.s32 3, %v1071
        %v1073 = vrot.slane %v914, %v1072
        %v1074 = vlaneseq
        %v1075 = vshrl.u32 %v1074, 7
        %v1076 = vsub.s32 3, %v1075
        %v1077 = vrot.slane %v915, %v1076
        %v1078 = vmul.f32 %v1068, %v1073
        %v1079 = vmul.f32 %v1068, %v1077
        %v1080 = vadd.f32 %v1064, %v1078
        %v1081 = vadd.f32 %v1065, %v1079
        %1082 = vset.pattern.permute.xlu0 44
        %1083 = vperm.xlu0 %1082, %v216
        %v1084 = vpop.permute.xlu0 %1083
        %v1086 = vlaneseq
        %v1087 = vshrl.u32 %v1086, 7
        %v1088 = vsub.s32 0, %v1087
        %v1089 = vrot.slane %v948, %v1088
        %v1090 = vlaneseq
        %v1091 = vshrl.u32 %v1090, 7
        %v1092 = vsub.s32 0, %v1091
        %v1093 = vrot.slane %v949, %v1092
        %v1094 = vmul.f32 %v1084, %v1089
        %v1095 = vmul.f32 %v1084, %v1093
        %v1096 = vadd.f32 %v1080, %v1094
        %v1097 = vadd.f32 %v1081, %v1095
        %1098 = vset.pattern.permute.xlu0 45
        %1099 = vperm.xlu0 %1098, %v216
        %v1100 = vpop.permute.xlu0 %1099
        %v1102 = vlaneseq
        %v1103 = vshrl.u32 %v1102, 7
        %v1104 = vsub.s32 1, %v1103
        %v1105 = vrot.slane %v948, %v1104
        %v1106 = vlaneseq
        %v1107 = vshrl.u32 %v1106, 7
        %v1108 = vsub.s32 1, %v1107
        %v1109 = vrot.slane %v949, %v1108
        %v1110 = vmul.f32 %v1100, %v1105
        %v1111 = vmul.f32 %v1100, %v1109
        %v1112 = vadd.f32 %v1096, %v1110
        %v1113 = vadd.f32 %v1097, %v1111
        %1114 = vset.pattern.permute.xlu0 46
        %1115 = vperm.xlu0 %1114, %v216
        %v1116 = vpop.permute.xlu0 %1115
        %v1118 = vlaneseq
        %v1119 = vshrl.u32 %v1118, 7
        %v1120 = vsub.s32 2, %v1119
        %v1121 = vrot.slane %v948, %v1120
        %v1122 = vlaneseq
        %v1123 = vshrl.u32 %v1122, 7
        %v1124 = vsub.s32 2, %v1123
        %v1125 = vrot.slane %v949, %v1124
        %v1126 = vmul.f32 %v1116, %v1121
        %v1127 = vmul.f32 %v1116, %v1125
        %v1128 = vadd.f32 %v1112, %v1126
        %v1129 = vadd.f32 %v1113, %v1127
        %1130 = vset.pattern.permute.xlu0 47
        %1131 = vperm.xlu0 %1130, %v216
        %v1132 = vpop.permute.xlu0 %1131
        %v1134 = vlaneseq
        %v1135 = vshrl.u32 %v1134, 7
        %v1136 = vsub.s32 3, %v1135
        %v1137 = vrot.slane %v948, %v1136
        %v1138 = vlaneseq
        %v1139 = vshrl.u32 %v1138, 7
        %v1140 = vsub.s32 3, %v1139
        %v1141 = vrot.slane %v949, %v1140
        %v1142 = vmul.f32 %v1132, %v1137
        %v1143 = vmul.f32 %v1132, %v1141
        %v1144 = vadd.f32 %v1128, %v1142
        %v1145 = vadd.f32 %v1129, %v1143
        %v1146 = vadd.f32 %v1144, %v212
        %v1147 = vadd.f32 %v1145, %v213
        %v1148 = vmax.f32 %v1146, 0.0
        %v1149 = vmax.f32 %v1147, 0.0
        %1150 = vst [vmem:[%s211] sm:$0xff] %v1148
        %1151 = vst [vmem:[%s211 + $0x8] sm:$0xff] %v1149
        %s1152 = sand.u32 %s97, 1
        %s1153 = scalar_lea.sflag [#allocation4], %s1152
        %s1154 = sand.u32 %s97, 1
        %s1155 = smul.addr %s1154, 16
        %s1156 = scalar_lea.vmem [#allocation8], %s1155
        // Predicated region
        $region45: #{tpu_custom_call.1} parent=31 // pred_check
          %p1157 = pneg %p107
        $region46: #{tpu_custom_call.1} parent=31 // pred_check_branch
          %1159 = sbr.rel (%p1157) target = $region48
        $region47: #{tpu_custom_call.1} parent=31 // pred_region
          %s1161 = ssub.s32 256, 256
          %1162 = vsyncadd %s1153, %s1161
          %s1163 = smul.addr %s21, 2
          %s1164 = smul.addr %s1163, 128
          %s1165 = scalar_lea.hbm %s3, %s1164
          %s1167 = sshll.u32 %s1156, 4
          %s1168 = int_to_ptr.vmem [resolvable:$true] %s1167
          %1170 = dma.vmem_to_hbm [thread:$0]  %s1168, 256, %s1165, %s1153
        $region48: #{tpu_custom_call.1} parent=31 // pred_fallthru
          _
      $region32: #{tpu_custom_call.1} parent=5 // pred_fallthru
        _
      %p1171 = scmp.le.s32.totalorder 2, %s16
      // Predicated region
      $region49: #{tpu_custom_call.1} parent=5 // pred_check
        %p1172 = pneg %p1171
      $region50: #{tpu_custom_call.1} parent=5 // pred_check_branch
        %1174 = sbr.rel (%p1172) target = $region52
      $region51: #{tpu_custom_call.1} parent=5 // pred_region
        %s1175 = ssub.s32 %s16, 2
        // Predicated region
        $region53: #{tpu_custom_call.1} parent=51 // pred_check
          %p1176 = pneg %p113
        $region54: #{tpu_custom_call.1} parent=51 // pred_check_branch
          %1178 = sbr.rel (%p1176) target = $region56
        $region55: #{tpu_custom_call.1} parent=51 // pred_region
          %s1179 = sand.u32 %s98, 1
          %s1180 = scalar_lea.sflag [#allocation4], %s1179
          %s1181 = sand.u32 %s98, 1
          %s1182 = smul.addr %s1181, 16
          %s1183 = scalar_lea.vmem [#allocation8], %s1182
          %1184 = dma.done %s1180, 256
        $region56: #{tpu_custom_call.1} parent=51 // pred_fallthru
          _
      $region52: #{tpu_custom_call.1} parent=5 // pred_fallthru
        _
    $region6: #{tpu_custom_call.1} parent=1 // loop_footer
      %s20 = sadd.s32 1, %s16
    $region7: #{tpu_custom_call.1} parent=1 // loop_footer_branch
      %15 = sbr.rel target = $region3
    $region8: #{tpu_custom_call.1} parent=1 // loop_exit
      _
    %1185 = vsyncpa [#allocation3], 1
    %s1186 = scalar_lea.sflag [#allocation3], 1
    %1187 = vsyncpa %s1186, 1
    %1188 = vsyncpa [#allocation6], 1
    %1189 = vsyncpa [#allocation4], 1
    %s1190 = scalar_lea.sflag [#allocation4], 1
    %1191 = vsyncpa %s1190, 1

</llo_original>
